<compile_context>
chip_gen: v7x
topology: tpu7x:2x2x1
jax: 0.10.0
libtpu: 0.0.40
codegen_flags: <defaults>
</compile_context>

<pallas_src>
import math
import numpy as np
import jax
import jax.numpy as jnp
from jax.experimental import pallas as pl
from jax.experimental.pallas import tpu as pltpu

MAX_K = 7
PAD = MAX_K // 2
ALIGN = 8            # sublane alignment offset for the padded-H scratch


def _gelu(x):
    # tanh-approximate GELU
    c = math.sqrt(2.0 / math.pi)
    return 0.5 * x * (1.0 + jnp.tanh(c * (x + 0.044715 * x * x * x)))


def _msef_kernel(x_ref, w1_ref, dwm_ref, w2_ref, sh_ref, so_ref,
                 o_ref, pad_ref):
    Bt, H, WC = x_ref.shape
    Wp = pad_ref.shape[-1]                       # W * Ch (packed hidden width)
    M = Bt * H

    s1, b1 = sh_ref[0:1, :], sh_ref[1:2, :]
    dwb = sh_ref[2:3, :]
    s2, b2 = sh_ref[3:4, :], sh_ref[4:5, :]
    s3, b3 = so_ref[0:1, :], so_ref[1:2, :]

    # ---- fc1: block-diagonal 1x1 conv (bf16 MXU) -> GELU -> BN1
    xm = x_ref[...].reshape(M, WC).astype(jnp.bfloat16)
    h = jnp.dot(xm, w1_ref[...], preferred_element_type=jnp.float32)
    h = _gelu(h) * s1 + b1                                   # (M, Wp), f32

    # ---- MultiScaleDWConv as ONE MXU matmul over dy-stacked, H-padded windows.
    # Interior store is sublane-aligned (rows ALIGN..ALIGN+H); halo rows are
    # re-zeroed every step (NOT hoisted behind pl.when(pid==0): unsafe under
    # "parallel" megacore sharding since core 1 never runs step 0).
    zero_halo = jnp.zeros((Bt, PAD, Wp), jnp.float32)
    pad_ref[:, ALIGN - PAD:ALIGN, :] = zero_halo             # top halo
    pad_ref[:, ALIGN + H:ALIGN + H + PAD, :] = zero_halo     # bottom halo
    pad_ref[:, ALIGN:ALIGN + H, :] = h.reshape(Bt, H, Wp)    # interior (aligned)

    xcat = jnp.concatenate(
        [pad_ref[:, ALIGN - PAD + dy:ALIGN - PAD + dy + H, :]
         for dy in range(MAX_K)], axis=2).reshape(M, MAX_K * Wp)
    dw = jnp.dot(xcat.astype(jnp.bfloat16), dwm_ref[...],
                 preferred_element_type=jnp.float32)

    # ---- dwconv bias + residual + GELU + BN2 (self.norm)
    y = _gelu(dw + dwb + h) * s2 + b2                        # (M, Wp)

    # ---- fc2: block-diagonal 1x1 conv -> BN3 (lane-dense store)
    out = jnp.dot(y.astype(jnp.bfloat16), w2_ref[...],
                  preferred_element_type=jnp.float32)
    o_ref[...] = (out * s3 + b3).reshape(Bt, H, WC)


def pack_msef_params(p, W):
    """One-time host-side packing into lane-dense / block-diagonal tensors.

    Call ONCE (e.g. at init) and reuse the result across forward calls —
    per perf review the kron / stencil build and H2D upload must not re-run
    every call.
    """
    C, Ch = np.asarray(p["w1"]).shape
    Wp = W * Ch
    eyeW = np.eye(W, dtype=np.float32)
    w1 = np.asarray(p["w1"], np.float32)
    w2 = np.asarray(p["w2"], np.float32)
    K = np.asarray(p["dww"], np.float32).reshape(MAX_K, MAX_K, Ch)

    w1_bd = np.kron(eyeW, w1)                                # (W*C, W*Ch)
    w2_bd = np.kron(eyeW, w2)                                # (W*Ch, W*C)

    def tile_vec(v):                                         # (1, m) -> (1, W*m)
        return np.tile(np.asarray(v, np.float32).reshape(1, -1), (1, W))

    # Banded depthwise stencil matrix (MAX_K*W*Ch, W*Ch), vectorised over W:
    #   row index  dy*(W*Ch) + w'*Ch + c'   (matches xcat layout)
    #   col index  w*Ch + c
    D = np.zeros((MAX_K, W, Ch, W, Ch), np.float32)
    ar_w = np.arange(W)
    ar_c = np.arange(Ch)
    for dy in range(MAX_K):
        for dx in range(MAX_K):
            wp = ar_w + dx - PAD
            ok = (wp >= 0) & (wp < W)
            wv, wpv = ar_w[ok], wp[ok]
            D[dy, wpv[:, None], ar_c[None, :], wv[:, None], ar_c[None, :]] = \
                np.broadcast_to(K[dy, dx, :], (wv.size, Ch))
    dwm = D.reshape(MAX_K * Wp, Wp)

    # Merge the per-channel scale/shift/bias vectors into two slabs
    # (review item: fewer DMA descriptors / buffers).
    slab_h = np.concatenate(
        [tile_vec(p["s1"]), tile_vec(p["b1"]), tile_vec(p["dwb"]),
         tile_vec(p["s2"]), tile_vec(p["b2"])], axis=0)          # (5, W*Ch)
    slab_o = np.concatenate(
        [tile_vec(p["s3"]), tile_vec(p["b3"])], axis=0)          # (2, W*C)

    return dict(
        w1=jnp.asarray(w1_bd, jnp.bfloat16),     # bf16 MXU operands
        dwm=jnp.asarray(dwm, jnp.bfloat16),
        w2=jnp.asarray(w2_bd, jnp.bfloat16),
        sh=jnp.asarray(slab_h, jnp.float32),
        so=jnp.asarray(slab_o, jnp.float32),
        meta=dict(C=int(C), Ch=int(Ch), W=int(W)),
    )


def _choose_block_batch(B, H):
    """Images fused per grid step: raise the matmul M dim (target ~256 rows)
    while keeping >=2 grid steps whenever B allows (v7x has 2 TensorCores)."""
    target_rows = 256
    bt = max(1, min(B, max(1, target_rows // max(H, 1))))
    while bt > 1 and B // bt < 2:        # keep second TC busy on v7x
        bt -= 1
    while B % bt != 0:                   # blocks must tile B exactly
        bt -= 1
    return bt


def msef_forward(x_nchw, packed):
    meta = packed["meta"]
    C, Ch, W = meta["C"], meta["Ch"], meta["W"]
    B, Cx, H, Wx = x_nchw.shape
    assert Cx == C and Wx == W
    WC, Wp = W * C, W * Ch

    x = jnp.transpose(x_nchw, (0, 2, 3, 1)).astype(jnp.float32)
    xp = x.reshape(B, H, WC)                                  # lane-dense rows

    Bt = _choose_block_batch(B, H)
    grid = (B // Bt,)

    def const_spec(arr):
        # Constant-index weights/slabs: single buffer, fetched once.
        return pl.BlockSpec(arr.shape, lambda b: (0, 0),
                            pipeline_mode=pl.Buffered(1))

    in_specs = [
        pl.BlockSpec((Bt, H, WC), lambda b: (b, 0, 0)),
        const_spec(packed["w1"]),
        const_spec(packed["dwm"]),
        const_spec(packed["w2"]),
        const_spec(packed["sh"]),
        const_spec(packed["so"]),
    ]
    out_spec = pl.BlockSpec((Bt, H, WC), lambda b: (b, 0, 0))

    pad_rows = ALIGN + H + ALIGN
    # VMEM budget: double-buffered x/out blocks, single-buffered weights/slabs,
    # padded scratch; x2 + headroom for in-kernel temporaries (xcat etc.).
    vmem_bytes = (
        2 * 2 * Bt * H * WC * 4
        + 2 * (packed["w1"].size + packed["dwm"].size + packed["w2"].size)
        + 4 * (packed["sh"].size + packed["so"].size)
        + Bt * pad_rows * Wp * 4)
    vmem_limit = min(int(vmem_bytes) * 2 + (4 << 20), 100 << 20)

    flops = 2 * B * H * (WC * Wp + MAX_K * Wp * Wp + Wp * WC)
    transcendentals = 2 * B * H * Wp                  # two tanh-GELU passes
    bytes_accessed = (
        2 * B * H * WC * 4
        + 2 * (packed["w1"].size + packed["dwm"].size + packed["w2"].size)
        + 4 * (packed["sh"].size + packed["so"].size))

    out = pl.pallas_call(
        _msef_kernel,
        out_shape=jax.ShapeDtypeStruct((B, H, WC), jnp.float32),
        grid_spec=pltpu.PrefetchScalarGridSpec(
            num_scalar_prefetch=0,
            grid=grid,
            in_specs=in_specs,
            out_specs=out_spec,
            scratch_shapes=[pltpu.VMEM((Bt, pad_rows, Wp), jnp.float32)],
        ),
        compiler_params=pltpu.CompilerParams(
            dimension_semantics=("parallel",),
            vmem_limit_bytes=vmem_limit),
        cost_estimate=pl.CostEstimate(
            flops=int(flops),
            transcendentals=int(transcendentals),
            bytes_accessed=int(bytes_accessed)),
    )(xp, packed["w1"], packed["dwm"], packed["w2"],
      packed["sh"], packed["so"])

    out = out.reshape(B, H, W, C)
    return jnp.transpose(out, (0, 3, 1, 2))                   # back to NCHW


def init_params(key, in_features):
    scales = (1, 3, 5, 7)
    n = len(scales)
    Ch = in_features // 6
    channels = [Ch - Ch // n * (n - 1)] + [Ch // n] * (n - 1)
    ks = jax.random.split(key, 16)

    def vec(k, m, scale=0.1):
        return scale * jax.random.normal(k, (1, m), jnp.float32)

    p = {}
    p["w1"] = 0.1 * jax.random.normal(ks[0], (in_features, Ch), jnp.float32)
    p["s1"] = 1.0 + vec(ks[1], Ch)
    p["b1"] = vec(ks[2], Ch)

    dww = jnp.zeros((MAX_K, MAX_K, Ch), jnp.float32)
    c0 = 0
    for i, (cg, k) in enumerate(zip(channels, scales)):
        wk = (1.0 / k) * jax.random.normal(ks[3 + i], (k, k, cg), jnp.float32)
        off = (MAX_K - k) // 2
        dww = dww.at[off:off + k, off:off + k, c0:c0 + cg].set(wk)
        c0 += cg
    p["dww"] = dww.reshape(MAX_K * MAX_K, Ch)
    p["dwb"] = vec(ks[7], Ch)

    p["s2"] = 1.0 + vec(ks[8], Ch)
    p["b2"] = vec(ks[9], Ch)
    p["w2"] = 0.1 * jax.random.normal(ks[10], (Ch, in_features), jnp.float32)
    p["s3"] = 1.0 + vec(ks[11], in_features)
    p["b3"] = vec(ks[12], in_features)
    return p


def ref_forward(x_nchw, p):
    """Pure-JAX reference (XLA convs) used only for correctness checking."""
    x = jnp.transpose(x_nchw, (0, 2, 3, 1)).astype(jnp.float32)
    Ch = p["w1"].shape[1]
    h = jnp.einsum("bhwc,cd->bhwd", x, p["w1"])
    h = _gelu(h)
    h = h * p["s1"][0] + p["b1"][0]
    k = p["dww"].reshape(MAX_K, MAX_K, 1, Ch)            # HWIO, depthwise
    dw = jax.lax.conv_general_dilated(
        h, k, window_strides=(1, 1), padding=((PAD, PAD), (PAD, PAD)),
        dimension_numbers=("NHWC", "HWIO", "NHWC"),
        feature_group_count=Ch) + p["dwb"][0]
    y = _gelu(dw + h)
    y = y * p["s2"][0] + p["b2"][0]
    out = jnp.einsum("bhwd,dc->bhwc", y, p["w2"])
    out = out * p["s3"][0] + p["b3"][0]
    return jnp.transpose(out, (0, 3, 1, 2))


if __name__ == "__main__":
    key = jax.random.PRNGKey(0)
    kx, kp = jax.random.split(key)
    B, C, H, W = 4, 48, 16, 16      # in_features=48 -> hidden Ch=8, W*Ch=128
    x = jax.random.normal(kx, (B, C, H, W), jnp.float32)
    params = init_params(kp, C)

    # One-time packing (hoisted out of the forward path per perf review).
    packed = pack_msef_params(params, W)

    out = jax.block_until_ready(msef_forward(x, packed))
    ref = ref_forward(x, params)

    assert out.shape == (B, C, H, W)
    # bf16 MXU operands across three chained dots (explicit precision choice
    # per perf review) -> allow ~1e-2 headroom; structural bugs give O(0.1+).
    np.testing.assert_allclose(np.asarray(out), np.asarray(ref),
                               rtol=1e-2, atol=1e-2)
    print("KERNEL_OK")
</pallas_src>

<mosaic_0001>
module attributes {stable_mosaic.version = 11 : i64} {
  func.func @_msef_kernel(%arg0: i32, %arg1: memref<2x16x768xf32, #tpu.memory_space<vmem>>, %arg2: memref<768x128xbf16, #tpu.memory_space<vmem>>, %arg3: memref<896x128xbf16, #tpu.memory_space<vmem>>, %arg4: memref<128x768xbf16, #tpu.memory_space<vmem>>, %arg5: memref<5x128xf32, #tpu.memory_space<vmem>>, %arg6: memref<2x768xf32, #tpu.memory_space<vmem>>, %arg7: memref<2x16x768xf32, #tpu.memory_space<vmem>>, %arg8: memref<2x32x128xf32, #tpu.memory_space<vmem>>) attributes {dimension_semantics = [#tpu.dimension_semantics<parallel>], iteration_bounds = array<i64: 2>, scalar_prefetch = 0 : i64, scratch_operands = 1 : i64, tpu.core_type = #tpu.core_type<tc>, window_params = [{transform_indices = @transform_0, window_bounds = array<i64: 2, 16, 768>}, {pipeline_mode = #tpu.pipeline_mode<synchronous>, transform_indices = @transform_1, window_bounds = array<i64: 768, 128>}, {pipeline_mode = #tpu.pipeline_mode<synchronous>, transform_indices = @transform_2, window_bounds = array<i64: 896, 128>}, {pipeline_mode = #tpu.pipeline_mode<synchronous>, transform_indices = @transform_3, window_bounds = array<i64: 128, 768>}, {pipeline_mode = #tpu.pipeline_mode<synchronous>, transform_indices = @transform_4, window_bounds = array<i64: 5, 128>}, {pipeline_mode = #tpu.pipeline_mode<synchronous>, transform_indices = @transform_5, window_bounds = array<i64: 2, 768>}, {transform_indices = @transform_6, window_bounds = array<i64: 2, 16, 768>}]} {
    %c0 = arith.constant 0 : index
    %c0_0 = arith.constant 0 : index
    %0 = vector.load %arg5[%c0, %c0_0] : memref<5x128xf32, #tpu.memory_space<vmem>>, vector<1x128xf32>
    %c1 = arith.constant 1 : index
    %c0_1 = arith.constant 0 : index
    %1 = vector.load %arg5[%c1, %c0_1] : memref<5x128xf32, #tpu.memory_space<vmem>>, vector<1x128xf32>
    %c2 = arith.constant 2 : index
    %c0_2 = arith.constant 0 : index
    %2 = vector.load %arg5[%c2, %c0_2] : memref<5x128xf32, #tpu.memory_space<vmem>>, vector<1x128xf32>
    %c3 = arith.constant 3 : index
    %c0_3 = arith.constant 0 : index
    %3 = vector.load %arg5[%c3, %c0_3] : memref<5x128xf32, #tpu.memory_space<vmem>>, vector<1x128xf32>
    %c4 = arith.constant 4 : index
    %c0_4 = arith.constant 0 : index
    %4 = vector.load %arg5[%c4, %c0_4] : memref<5x128xf32, #tpu.memory_space<vmem>>, vector<1x128xf32>
    %c0_5 = arith.constant 0 : index
    %c0_6 = arith.constant 0 : index
    %5 = vector.load %arg6[%c0_5, %c0_6] : memref<2x768xf32, #tpu.memory_space<vmem>>, vector<1x768xf32>
    %c1_7 = arith.constant 1 : index
    %c0_8 = arith.constant 0 : index
    %6 = vector.load %arg6[%c1_7, %c0_8] : memref<2x768xf32, #tpu.memory_space<vmem>>, vector<1x768xf32>
    %c0_9 = arith.constant 0 : index
    %c0_10 = arith.constant 0 : index
    %c0_11 = arith.constant 0 : index
    %7 = vector.load %arg1[%c0_9, %c0_10, %c0_11] : memref<2x16x768xf32, #tpu.memory_space<vmem>>, vector<2x16x768xf32>
    %8 = vector.shape_cast %7 : vector<2x16x768xf32> to vector<32x768xf32>
    %9 = arith.truncf %8 : vector<32x768xf32> to vector<32x768xbf16>
    %c0_12 = arith.constant 0 : index
    %c0_13 = arith.constant 0 : index
    %10 = vector.load %arg2[%c0_12, %c0_13] : memref<768x128xbf16, #tpu.memory_space<vmem>>, vector<768x128xbf16>
    %cst = arith.constant dense<0.000000e+00> : vector<32x128xf32>
    %11 = tpu.matmul %9, %10, %cst {dimension_numbers = #tpu.dot_dimension_numbers<[1], [0], [0], [1], [0, 0, 1, 1], [], []>} : vector<32x768xbf16>, vector<768x128xbf16>, vector<32x128xf32> -> vector<32x128xf32>
    %cst_14 = arith.constant 5.000000e-01 : f32
    %12 = vector.broadcast %cst_14 : f32 to vector<32x128xf32>
    %13 = arith.mulf %12, %11 : vector<32x128xf32>
    %cst_15 = arith.constant 4.471500e-02 : f32
    %14 = vector.broadcast %cst_15 : f32 to vector<32x128xf32>
    %15 = arith.mulf %14, %11 : vector<32x128xf32>
    %16 = arith.mulf %15, %11 : vector<32x128xf32>
    %17 = arith.mulf %16, %11 : vector<32x128xf32>
    %18 = arith.addf %11, %17 : vector<32x128xf32>
    %cst_16 = arith.constant 0.797884583 : f32
    %19 = vector.broadcast %cst_16 : f32 to vector<32x128xf32>
    %20 = arith.mulf %19, %18 : vector<32x128xf32>
    %21 = math.tanh %20 : vector<32x128xf32>
    %cst_17 = arith.constant 1.000000e+00 : f32
    %22 = vector.broadcast %cst_17 : f32 to vector<32x128xf32>
    %23 = arith.addf %22, %21 : vector<32x128xf32>
    %24 = arith.mulf %13, %23 : vector<32x128xf32>
    %25 = vector.broadcast %0 : vector<1x128xf32> to vector<32x128xf32>
    %26 = arith.mulf %24, %25 : vector<32x128xf32>
    %27 = vector.broadcast %1 : vector<1x128xf32> to vector<32x128xf32>
    %28 = arith.addf %26, %27 : vector<32x128xf32>
    %cst_18 = arith.constant 0.000000e+00 : f32
    %29 = vector.broadcast %cst_18 : f32 to vector<2x3x128xf32>
    %c0_19 = arith.constant 0 : index
    %c5 = arith.constant 5 : index
    %c0_20 = arith.constant 0 : index
    %30 = vector.load %arg8[%c0_19, %c5, %c0_20] : memref<2x32x128xf32, #tpu.memory_space<vmem>>, vector<2x3x128xf32>
    tpu.vector_store %arg8[%c0_19, %c5, %c0_20], %29 {strides = array<i32>} : memref<2x32x128xf32, #tpu.memory_space<vmem>>, vector<2x3x128xf32>,
    %c0_21 = arith.constant 0 : index
    %c24 = arith.constant 24 : index
    %c0_22 = arith.constant 0 : index
    %31 = vector.load %arg8[%c0_21, %c24, %c0_22] : memref<2x32x128xf32, #tpu.memory_space<vmem>>, vector<2x3x128xf32>
    tpu.vector_store %arg8[%c0_21, %c24, %c0_22], %29 {strides = array<i32>} : memref<2x32x128xf32, #tpu.memory_space<vmem>>, vector<2x3x128xf32>,
    %32 = vector.shape_cast %28 : vector<32x128xf32> to vector<2x16x128xf32>
    %c0_23 = arith.constant 0 : index
    %c8 = arith.constant 8 : index
    %c0_24 = arith.constant 0 : index
    %33 = vector.load %arg8[%c0_23, %c8, %c0_24] : memref<2x32x128xf32, #tpu.memory_space<vmem>>, vector<2x16x128xf32>
    tpu.vector_store %arg8[%c0_23, %c8, %c0_24], %32 {strides = array<i32>} : memref<2x32x128xf32, #tpu.memory_space<vmem>>, vector<2x16x128xf32>,
    %c0_25 = arith.constant 0 : index
    %c5_26 = arith.constant 5 : index
    %c0_27 = arith.constant 0 : index
    %34 = vector.load %arg8[%c0_25, %c5_26, %c0_27] : memref<2x32x128xf32, #tpu.memory_space<vmem>>, vector<2x16x128xf32>
    %c0_28 = arith.constant 0 : index
    %c6 = arith.constant 6 : index
    %c0_29 = arith.constant 0 : index
    %35 = vector.load %arg8[%c0_28, %c6, %c0_29] : memref<2x32x128xf32, #tpu.memory_space<vmem>>, vector<2x16x128xf32>
    %c0_30 = arith.constant 0 : index
    %c7 = arith.constant 7 : index
    %c0_31 = arith.constant 0 : index
    %36 = vector.load %arg8[%c0_30, %c7, %c0_31] : memref<2x32x128xf32, #tpu.memory_space<vmem>>, vector<2x16x128xf32>
    %c0_32 = arith.constant 0 : index
    %c8_33 = arith.constant 8 : index
    %c0_34 = arith.constant 0 : index
    %37 = vector.load %arg8[%c0_32, %c8_33, %c0_34] : memref<2x32x128xf32, #tpu.memory_space<vmem>>, vector<2x16x128xf32>
    %c0_35 = arith.constant 0 : index
    %c9 = arith.constant 9 : index
    %c0_36 = arith.constant 0 : index
    %38 = vector.load %arg8[%c0_35, %c9, %c0_36] : memref<2x32x128xf32, #tpu.memory_space<vmem>>, vector<2x16x128xf32>
    %c0_37 = arith.constant 0 : index
    %c10 = arith.constant 10 : index
    %c0_38 = arith.constant 0 : index
    %39 = vector.load %arg8[%c0_37, %c10, %c0_38] : memref<2x32x128xf32, #tpu.memory_space<vmem>>, vector<2x16x128xf32>
    %c0_39 = arith.constant 0 : index
    %c11 = arith.constant 11 : index
    %c0_40 = arith.constant 0 : index
    %40 = vector.load %arg8[%c0_39, %c11, %c0_40] : memref<2x32x128xf32, #tpu.memory_space<vmem>>, vector<2x16x128xf32>
    %41 = tpu.concatenate %34, %35, %36, %37, %38, %39, %40 in 2 : vector<2x16x128xf32>, vector<2x16x128xf32>, vector<2x16x128xf32>, vector<2x16x128xf32>, vector<2x16x128xf32>, vector<2x16x128xf32>, vector<2x16x128xf32> -> vector<2x16x896xf32>
    %42 = vector.shape_cast %41 : vector<2x16x896xf32> to vector<32x896xf32>
    %43 = arith.truncf %42 : vector<32x896xf32> to vector<32x896xbf16>
    %c0_41 = arith.constant 0 : index
    %c0_42 = arith.constant 0 : index
    %44 = vector.load %arg3[%c0_41, %c0_42] : memref<896x128xbf16, #tpu.memory_space<vmem>>, vector<896x128xbf16>
    %cst_43 = arith.constant dense<0.000000e+00> : vector<32x128xf32>
    %45 = tpu.matmul %43, %44, %cst_43 {dimension_numbers = #tpu.dot_dimension_numbers<[1], [0], [0], [1], [0, 0, 1, 1], [], []>} : vector<32x896xbf16>, vector<896x128xbf16>, vector<32x128xf32> -> vector<32x128xf32>
    %46 = vector.broadcast %2 : vector<1x128xf32> to vector<32x128xf32>
    %47 = arith.addf %45, %46 : vector<32x128xf32>
    %48 = arith.addf %47, %28 : vector<32x128xf32>
    %cst_44 = arith.constant 5.000000e-01 : f32
    %49 = vector.broadcast %cst_44 : f32 to vector<32x128xf32>
    %50 = arith.mulf %49, %48 : vector<32x128xf32>
    %cst_45 = arith.constant 4.471500e-02 : f32
    %51 = vector.broadcast %cst_45 : f32 to vector<32x128xf32>
    %52 = arith.mulf %51, %48 : vector<32x128xf32>
    %53 = arith.mulf %52, %48 : vector<32x128xf32>
    %54 = arith.mulf %53, %48 : vector<32x128xf32>
    %55 = arith.addf %48, %54 : vector<32x128xf32>
    %cst_46 = arith.constant 0.797884583 : f32
    %56 = vector.broadcast %cst_46 : f32 to vector<32x128xf32>
    %57 = arith.mulf %56, %55 : vector<32x128xf32>
    %58 = math.tanh %57 : vector<32x128xf32>
    %cst_47 = arith.constant 1.000000e+00 : f32
    %59 = vector.broadcast %cst_47 : f32 to vector<32x128xf32>
    %60 = arith.addf %59, %58 : vector<32x128xf32>
    %61 = arith.mulf %50, %60 : vector<32x128xf32>
    %62 = vector.broadcast %3 : vector<1x128xf32> to vector<32x128xf32>
    %63 = arith.mulf %61, %62 : vector<32x128xf32>
    %64 = vector.broadcast %4 : vector<1x128xf32> to vector<32x128xf32>
    %65 = arith.addf %63, %64 : vector<32x128xf32>
    %66 = arith.truncf %65 : vector<32x128xf32> to vector<32x128xbf16>
    %c0_48 = arith.constant 0 : index
    %c0_49 = arith.constant 0 : index
    %67 = vector.load %arg4[%c0_48, %c0_49] : memref<128x768xbf16, #tpu.memory_space<vmem>>, vector<128x768xbf16>
    %cst_50 = arith.constant dense<0.000000e+00> : vector<32x768xf32>
    %68 = tpu.matmul %66, %67, %cst_50 {dimension_numbers = #tpu.dot_dimension_numbers<[1], [0], [0], [1], [0, 0, 1, 1], [], []>} : vector<32x128xbf16>, vector<128x768xbf16>, vector<32x768xf32> -> vector<32x768xf32>
    %69 = vector.broadcast %5 : vector<1x768xf32> to vector<32x768xf32>
    %70 = arith.mulf %68, %69 : vector<32x768xf32>
    %71 = vector.broadcast %6 : vector<1x768xf32> to vector<32x768xf32>
    %72 = arith.addf %70, %71 : vector<32x768xf32>
    %73 = vector.shape_cast %72 : vector<32x768xf32> to vector<2x16x768xf32>
    %c0_51 = arith.constant 0 : index
    %c0_52 = arith.constant 0 : index
    %c0_53 = arith.constant 0 : index
    %74 = vector.load %arg7[%c0_51, %c0_52, %c0_53] : memref<2x16x768xf32, #tpu.memory_space<vmem>>, vector<2x16x768xf32>
    tpu.vector_store %arg7[%c0_51, %c0_52, %c0_53], %73 {strides = array<i32>} : memref<2x16x768xf32, #tpu.memory_space<vmem>>, vector<2x16x768xf32>,
    return
  }
  func.func @transform_0(%arg0: i32) -> (i32, i32, i32) {
    %c0_i32 = arith.constant 0 : i32
    %c0_i32_0 = arith.constant 0 : i32
    %c0_i32_1 = arith.constant 0 : i32
    return %arg0, %c0_i32, %c0_i32_0 : i32, i32, i32
  }
  func.func @transform_1(%arg0: i32) -> (i32, i32) {
    %c0_i32 = arith.constant 0 : i32
    %c0_i32_0 = arith.constant 0 : i32
    %c0_i32_1 = arith.constant 0 : i32
    return %c0_i32, %c0_i32_0 : i32, i32
  }
  func.func @transform_2(%arg0: i32) -> (i32, i32) {
    %c0_i32 = arith.constant 0 : i32
    %c0_i32_0 = arith.constant 0 : i32
    %c0_i32_1 = arith.constant 0 : i32
    return %c0_i32, %c0_i32_0 : i32, i32
  }
  func.func @transform_3(%arg0: i32) -> (i32, i32) {
    %c0_i32 = arith.constant 0 : i32
    %c0_i32_0 = arith.constant 0 : i32
    %c0_i32_1 = arith.constant 0 : i32
    return %c0_i32, %c0_i32_0 : i32, i32
  }
  func.func @transform_4(%arg0: i32) -> (i32, i32) {
    %c0_i32 = arith.constant 0 : i32
    %c0_i32_0 = arith.constant 0 : i32
    %c0_i32_1 = arith.constant 0 : i32
    return %c0_i32, %c0_i32_0 : i32, i32
  }
  func.func @transform_5(%arg0: i32) -> (i32, i32) {
    %c0_i32 = arith.constant 0 : i32
    %c0_i32_0 = arith.constant 0 : i32
    %c0_i32_1 = arith.constant 0 : i32
    return %c0_i32, %c0_i32_0 : i32, i32
  }
  func.func @transform_6(%arg0: i32) -> (i32, i32, i32) {
    %c0_i32 = arith.constant 0 : i32
    %c0_i32_0 = arith.constant 0 : i32
    %c0_i32_1 = arith.constant 0 : i32
    return %arg0, %c0_i32, %c0_i32_0 : i32, i32, i32
  }
}

</mosaic_0001>

<llo_original>
// kernel: tpu_custom_call.1
$region0: #{tpu_custom_call.1}
  #allocation0 [shape = 'u32[]', space=smem, size = 0x4, offset = 0x4, fixed_abs, tag = 'smem constant byte address 0x4 - core index']
  #allocation1 [shape = 'u32[144,128]{1,0:T(1,128)}', space=vmem, size = 0x12000, scoped, tag = 'internal scratch']
  #allocation2 [shape = 'f32[2,32,128]{2,1,0:T(8,128)}', space=vmem, size = 0x8000, scoped, tag = 'scratch operand']
  %s0 = inlined_call_operand.hbm [shape: f32[4,16,768], index: 0, kind: input, shape index: {}]
  %s1 = inlined_call_operand.hbm [shape: bf16[768,128], index: 1, kind: input, shape index: {}]
  %s2 = inlined_call_operand.hbm [shape: bf16[896,128], index: 2, kind: input, shape index: {}]
  %s3 = inlined_call_operand.hbm [shape: bf16[128,768], index: 3, kind: input, shape index: {}]
  %s4 = inlined_call_operand.hbm [shape: f32[5,128], index: 4, kind: input, shape index: {}]
  %s5 = inlined_call_operand.vmem [shape: f32[2,768], index: 5, kind: input, shape index: {}]
  %s6 = inlined_call_operand.hbm [shape: f32[4,16,768], index: 6, kind: output, shape index: {}]
  %s7 = sld [smem:[#allocation0]]
  $region77: #{tpu_custom_call.1} parent=0
    _
  %s9 = ssub.s32 1, %s7
  %s10 = scalar_select 0, %s9, %s7
  $region1: #{tpu_custom_call.1} parent=0
    #allocation3 [shape = 'u8[196608]{0}', space=vmem, size = 0x30000, scoped, tag = 'input window, operand 0']
    #allocation4 [shape = 's32[2]{0}', space=sflag, size = 0x8, scoped, tag = 'scoped memory for tpu_custom_call.1']
    #allocation5 [shape = 's32[2]{0}', space=sflag, size = 0x8, scoped, tag = 'scoped memory for tpu_custom_call.1']
    #allocation6 [shape = 'u8[196608]{0}', space=vmem, size = 0x30000, scoped, tag = 'input window, operand 1, single buffered']
    #allocation7 [shape = 's32[1]{0}', space=sflag, size = 0x4, scoped, tag = 'scoped memory for tpu_custom_call.1']
    #allocation8 [shape = 'u8[229376]{0}', space=vmem, size = 0x38000, scoped, tag = 'input window, operand 2, single buffered']
    #allocation9 [shape = 'u8[196608]{0}', space=vmem, size = 0x30000, scoped, tag = 'input window, operand 3, single buffered']
    #allocation10 [shape = 's32[1]{0}', space=sflag, size = 0x4, scoped, tag = 'scoped memory for tpu_custom_call.1']
    #allocation11 [shape = 'u8[4096]{0}', space=vmem, size = 0x1000, scoped, tag = 'input window, operand 4, single buffered']
    #allocation12 [shape = 'u8[196608]{0}', space=vmem, size = 0x30000, scoped, tag = 'output window, operand 0']
    %11 = vsyncpa [#allocation4], 0
    %s12 = scalar_lea.sflag [#allocation4], 1
    %13 = vsyncpa %s12, 0
    %14 = vsyncpa [#allocation7], 0
    %15 = vsyncpa [#allocation10], 0
    %16 = vsyncpa [#allocation5], 0
    %s17 = scalar_lea.sflag [#allocation5], 1
    %18 = vsyncpa %s17, 0
    loop: start=0, step=1, limit=4
    $region2: #{tpu_custom_call.1} parent=1 // loop_pre_header
      _
    $region3: #{tpu_custom_call.1} parent=1 // loop_header
      %s20 = sphi 0, %s24
      %p21 = scmp.ge.s32.totalorder %s20, 4
      %s30 = sphi 0, %s32
      %s33 = sphi 0, %s30
      %s34 = sphi 0, %s33
      %s50 = sphi 0, %s34
      %s54 = sphi 0, %s54
      %s56 = sphi 0, %s54
      %s57 = sphi 0, %s56
      %s71 = sphi 0, %s57
      %s75 = sphi 0, %s75
      %s77 = sphi 0, %s75
      %s78 = sphi 0, %s77
      %s92 = sphi 0, %s78
      %s96 = sphi 0, %s96
      %s98 = sphi 0, %s96
      %s99 = sphi 0, %s98
      %s113 = sphi 0, %s99
      %s117 = sphi 0, %s117
      %s119 = sphi 0, %s117
      %s120 = sphi 0, %s119
      %s134 = sphi 0, %s120
      %s138 = sphi 0, %s138
      %s140 = sphi 0, %s138
      %s141 = sphi 0, %s140
      %s155 = sphi 0, %s141
      %s161 = sphi 0, %s163
      %s164 = sphi 0, %s161
      %s165 = sphi 0, %s164
      %s181 = sphi 0, %s165
    $region4: #{tpu_custom_call.1} parent=1 // loop_header_branch
      %23 = sbr.rel (%p21) target = $region8
    $region5: #{tpu_custom_call.1} parent=1 // loop_body
      %s25 = ssub.s32 %s20, 1
      %s26 = ssub.s32 %s20, 2
      %s27 = sadd.s32 %s20, 1
      %s28 = ssub.s32 %s20, %s27
      %p29 = scmp.eq.s32.totalorder %s28, 0
      %s31 = sadd.s32 %s30, 1
      %s32 = scalar_select %p29, %s30, %s31
      %p35 = pneg %p29
      %p36 = scmp.eq.s32.totalorder %s20, 1
      %p37 = por %p35, %p36
      %p38 = scmp.ne.s32.totalorder %s30, %s33
      %p39 = scmp.eq.s32.totalorder %s20, 0
      %p40 = por %p38, %p39
      %p41 = scmp.ne.s32.totalorder %s30, %s33
      %p42 = scmp.eq.s32.totalorder %s25, 1
      %p43 = por %p41, %p42
      %p44 = scmp.ne.s32.totalorder %s33, %s34
      %p45 = scmp.eq.s32.totalorder %s25, 0
      %p46 = por %p44, %p45
      %p47 = scmp.ne.s32.totalorder %s33, %s34
      %p48 = scmp.eq.s32.totalorder %s26, 1
      %p49 = por %p47, %p48
      %p51 = scmp.ne.s32.totalorder %s34, %s50
      %p52 = scmp.eq.s32.totalorder %s26, 0
      %p53 = por %p51, %p52
      %s55 = sadd.s32 %s54, 1
      %p58 = scmp.eq.s32.totalorder %s20, 1
      %p59 = scmp.ne.s32.totalorder %s54, %s56
      %p60 = scmp.eq.s32.totalorder %s20, 0
      %p61 = por %p59, %p60
      %p62 = scmp.ne.s32.totalorder %s54, %s56
      %p63 = scmp.eq.s32.totalorder %s25, 1
      %p64 = por %p62, %p63
      %p65 = scmp.ne.s32.totalorder %s56, %s57
      %p66 = scmp.eq.s32.totalorder %s25, 0
      %p67 = por %p65, %p66
      %p68 = scmp.ne.s32.totalorder %s56, %s57
      %p69 = scmp.eq.s32.totalorder %s26, 1
      %p70 = por %p68, %p69
      %p72 = scmp.ne.s32.totalorder %s57, %s71
      %p73 = scmp.eq.s32.totalorder %s26, 0
      %p74 = por %p72, %p73
      %s76 = sadd.s32 %s75, 1
      %p79 = scmp.eq.s32.totalorder %s20, 1
      %p80 = scmp.ne.s32.totalorder %s75, %s77
      %p81 = scmp.eq.s32.totalorder %s20, 0
      %p82 = por %p80, %p81
      %p83 = scmp.ne.s32.totalorder %s75, %s77
      %p84 = scmp.eq.s32.totalorder %s25, 1
      %p85 = por %p83, %p84
      %p86 = scmp.ne.s32.totalorder %s77, %s78
      %p87 = scmp.eq.s32.totalorder %s25, 0
      %p88 = por %p86, %p87
      %p89 = scmp.ne.s32.totalorder %s77, %s78
      %p90 = scmp.eq.s32.totalorder %s26, 1
      %p91 = por %p89, %p90
      %p93 = scmp.ne.s32.totalorder %s78, %s92
      %p94 = scmp.eq.s32.totalorder %s26, 0
      %p95 = por %p93, %p94
      %s97 = sadd.s32 %s96, 1
      %p100 = scmp.eq.s32.totalorder %s20, 1
      %p101 = scmp.ne.s32.totalorder %s96, %s98
      %p102 = scmp.eq.s32.totalorder %s20, 0
      %p103 = por %p101, %p102
      %p104 = scmp.ne.s32.totalorder %s96, %s98
      %p105 = scmp.eq.s32.totalorder %s25, 1
      %p106 = por %p104, %p105
      %p107 = scmp.ne.s32.totalorder %s98, %s99
      %p108 = scmp.eq.s32.totalorder %s25, 0
      %p109 = por %p107, %p108
      %p110 = scmp.ne.s32.totalorder %s98, %s99
      %p111 = scmp.eq.s32.totalorder %s26, 1
      %p112 = por %p110, %p111
      %p114 = scmp.ne.s32.totalorder %s99, %s113
      %p115 = scmp.eq.s32.totalorder %s26, 0
      %p116 = por %p114, %p115
      %s118 = sadd.s32 %s117, 1
      %p121 = scmp.eq.s32.totalorder %s20, 1
      %p122 = scmp.ne.s32.totalorder %s117, %s119
      %p123 = scmp.eq.s32.totalorder %s20, 0
      %p124 = por %p122, %p123
      %p125 = scmp.ne.s32.totalorder %s117, %s119
      %p126 = scmp.eq.s32.totalorder %s25, 1
      %p127 = por %p125, %p126
      %p128 = scmp.ne.s32.totalorder %s119, %s120
      %p129 = scmp.eq.s32.totalorder %s25, 0
      %p130 = por %p128, %p129
      %p131 = scmp.ne.s32.totalorder %s119, %s120
      %p132 = scmp.eq.s32.totalorder %s26, 1
      %p133 = por %p131, %p132
      %p135 = scmp.ne.s32.totalorder %s120, %s134
      %p136 = scmp.eq.s32.totalorder %s26, 0
      %p137 = por %p135, %p136
      %s139 = sadd.s32 %s138, 1
      %p142 = scmp.eq.s32.totalorder %s20, 1
      %p143 = scmp.ne.s32.totalorder %s138, %s140
      %p144 = scmp.eq.s32.totalorder %s20, 0
      %p145 = por %p143, %p144
      %p146 = scmp.ne.s32.totalorder %s138, %s140
      %p147 = scmp.eq.s32.totalorder %s25, 1
      %p148 = por %p146, %p147
      %p149 = scmp.ne.s32.totalorder %s140, %s141
      %p150 = scmp.eq.s32.totalorder %s25, 0
      %p151 = por %p149, %p150
      %p152 = scmp.ne.s32.totalorder %s140, %s141
      %p153 = scmp.eq.s32.totalorder %s26, 1
      %p154 = por %p152, %p153
      %p156 = scmp.ne.s32.totalorder %s141, %s155
      %p157 = scmp.eq.s32.totalorder %s26, 0
      %p158 = por %p156, %p157
      %s159 = ssub.s32 %s20, %s27
      %p160 = scmp.eq.s32.totalorder %s159, 0
      %s162 = sadd.s32 %s161, 1
      %s163 = scalar_select %p160, %s161, %s162
      %p166 = pneg %p160
      %p167 = scmp.eq.s32.totalorder %s20, 1
      %p168 = por %p166, %p167
      %p169 = scmp.ne.s32.totalorder %s161, %s164
      %p170 = scmp.eq.s32.totalorder %s20, 0
      %p171 = por %p169, %p170
      %p172 = scmp.ne.s32.totalorder %s161, %s164
      %p173 = scmp.eq.s32.totalorder %s25, 1
      %p174 = por %p172, %p173
      %p175 = scmp.ne.s32.totalorder %s164, %s165
      %p176 = scmp.eq.s32.totalorder %s25, 0
      %p177 = por %p175, %p176
      %p178 = scmp.ne.s32.totalorder %s164, %s165
      %p179 = scmp.eq.s32.totalorder %s26, 1
      %p180 = por %p178, %p179
      %p182 = scmp.ne.s32.totalorder %s165, %s181
      %p183 = scmp.eq.s32.totalorder %s26, 0
      %p184 = por %p182, %p183
      %p185 = scmp.le.s32.totalorder 1, %s20
      %p186 = scmp.lt.s32.totalorder %s20, 3
      %p187 = pnand %p185, %p186
      %p188 = pneg %p187
      // Predicated region
      $region9: #{tpu_custom_call.1} parent=5 // pred_check
        _
      $region10: #{tpu_custom_call.1} parent=5 // pred_check_branch
        %190 = sbr.rel (%p187) target = $region12
      $region11: #{tpu_custom_call.1} parent=5 // pred_region
        %s191 = ssub.s32 %s20, 1
        // Predicated region
        $region13: #{tpu_custom_call.1} parent=11 // pred_check
          %p192 = pneg %p67
        $region14: #{tpu_custom_call.1} parent=11 // pred_check_branch
          %194 = sbr.rel (%p192) target = $region16
        $region15: #{tpu_custom_call.1} parent=11 // pred_region
          %s196 = ssub.s32 6144, 6144
          %197 = vsyncadd [#allocation7], %s196
          %s198 = sshll.u32 [#allocation6], 4
          %s199 = int_to_ptr.vmem [resolvable:$true] %s198
          %204 = dma.hbm_to_vmem [thread:$0]  %s1, 6144, %s199, [#allocation7], 64, 64, 4
        $region16: #{tpu_custom_call.1} parent=11 // pred_fallthru
          _
        // Predicated region
        $region17: #{tpu_custom_call.1} parent=11 // pred_check
          %p205 = pneg %p88
        $region18: #{tpu_custom_call.1} parent=11 // pred_check_branch
          %207 = sbr.rel (%p205) target = $region20
        $region19: #{tpu_custom_call.1} parent=11 // pred_region
          %s209 = ssub.s32 7168, 7168
          %210 = vsyncadd [#allocation7], %s209
          %s211 = sshll.u32 [#allocation8], 4
          %s212 = int_to_ptr.vmem [resolvable:$true] %s211
          %217 = dma.hbm_to_vmem [thread:$0]  %s2, 7168, %s212, [#allocation7], 64, 64, 4
        $region20: #{tpu_custom_call.1} parent=11 // pred_fallthru
          _
        // Predicated region
        $region21: #{tpu_custom_call.1} parent=11 // pred_check
          %p218 = pneg %p109
        $region22: #{tpu_custom_call.1} parent=11 // pred_check_branch
          %220 = sbr.rel (%p218) target = $region24
        $region23: #{tpu_custom_call.1} parent=11 // pred_region
          %s222 = ssub.s32 6144, 6144
          %223 = vsyncadd [#allocation10], %s222
          %s224 = sshll.u32 [#allocation9], 4
          %s225 = int_to_ptr.vmem [resolvable:$true] %s224
          %230 = dma.hbm_to_vmem [thread:$0]  %s3, 6144, %s225, [#allocation10], 384, 384, 24
        $region24: #{tpu_custom_call.1} parent=11 // pred_fallthru
          _
        // Predicated region
        $region25: #{tpu_custom_call.1} parent=11 // pred_check
          %p231 = pneg %p130
        $region26: #{tpu_custom_call.1} parent=11 // pred_check_branch
          %233 = sbr.rel (%p231) target = $region28
        $region27: #{tpu_custom_call.1} parent=11 // pred_region
          %s235 = ssub.s32 128, 128
          %236 = vsyncadd [#allocation10], %s235
          %s238 = sshll.u32 [#allocation11], 4
          %s239 = int_to_ptr.vmem [resolvable:$true] %s238
          %241 = dma.hbm_to_vmem [thread:$0]  %s4, 128, %s239, [#allocation10]
        $region28: #{tpu_custom_call.1} parent=11 // pred_fallthru
          _
        // Predicated region
        $region29: #{tpu_custom_call.1} parent=11 // pred_check
          %p242 = pneg %p151
        $region30: #{tpu_custom_call.1} parent=11 // pred_check_branch
          %244 = sbr.rel (%p242) target = $region32
        $region31: #{tpu_custom_call.1} parent=11 // pred_region
          _
        $region32: #{tpu_custom_call.1} parent=11 // pred_fallthru
          _
      $region12: #{tpu_custom_call.1} parent=5 // pred_fallthru
        _
      %p245 = scmp.lt.s32.totalorder %s20, 2
      // Predicated region
      $region33: #{tpu_custom_call.1} parent=5 // pred_check
        %p246 = pneg %p245
      $region34: #{tpu_custom_call.1} parent=5 // pred_check_branch
        %248 = sbr.rel (%p246) target = $region36
      $region35: #{tpu_custom_call.1} parent=5 // pred_region
        // Predicated region
        $region37: #{tpu_custom_call.1} parent=35 // pred_check
          %p249 = pneg %p40
        $region38: #{tpu_custom_call.1} parent=35 // pred_check_branch
          %251 = sbr.rel (%p249) target = $region40
        $region39: #{tpu_custom_call.1} parent=35 // pred_region
          %s252 = sand.u32 %s30, 1
          %s253 = scalar_lea.sflag [#allocation4], %s252
          %s254 = sand.u32 %s30, 1
          %s255 = smul.addr %s254, 192
          %s256 = scalar_lea.vmem [#allocation3], %s255
          %s257 = smul.u32 2, %s20
          %s259 = ssub.s32 3072, 3072
          %260 = vsyncadd %s253, %s259
          %s261 = smul.addr %s257, 12
          %s262 = smul.addr %s261, 128
          %s263 = scalar_lea.hbm %s0, %s262
          %s264 = sshll.u32 %s256, 4
          %s265 = int_to_ptr.vmem [resolvable:$true] %s264
          %270 = dma.hbm_to_vmem [thread:$0]  %s263, 3072, %s265, %s253, 768, 768, 48
        $region40: #{tpu_custom_call.1} parent=35 // pred_fallthru
          _
      $region36: #{tpu_custom_call.1} parent=5 // pred_fallthru
        _
      %p271 = scmp.le.s32.totalorder 1, %s20
      %p272 = scmp.lt.s32.totalorder %s20, 3
      %p273 = pnand %p271, %p272
      %p274 = pneg %p273
      // Predicated region
      $region41: #{tpu_custom_call.1} parent=5 // pred_check
        _
      $region42: #{tpu_custom_call.1} parent=5 // pred_check_branch
        %276 = sbr.rel (%p273) target = $region44
      $region43: #{tpu_custom_call.1} parent=5 // pred_region
        %s277 = ssub.s32 %s20, 1
        %s278 = sand.u32 %s33, 1
        %s279 = scalar_lea.sflag [#allocation4], %s278
        %s280 = sand.u32 %s33, 1
        %s281 = smul.addr %s280, 192
        %s282 = scalar_lea.vmem [#allocation3], %s281
        // Predicated region
        $region45: #{tpu_custom_call.1} parent=43 // pred_check
          %p283 = pneg %p46
        $region46: #{tpu_custom_call.1} parent=43 // pred_check_branch
          %285 = sbr.rel (%p283) target = $region48
        $region47: #{tpu_custom_call.1} parent=43 // pred_region
          %286 = dma.done %s279, 3072
        $region48: #{tpu_custom_call.1} parent=43 // pred_fallthru
          _
        // Predicated region
        $region49: #{tpu_custom_call.1} parent=43 // pred_check
          %p287 = pneg %p67
        $region50: #{tpu_custom_call.1} parent=43 // pred_check_branch
          %289 = sbr.rel (%p287) target = $region52
        $region51: #{tpu_custom_call.1} parent=43 // pred_region
          %290 = dma.done [#allocation7], 6144
        $region52: #{tpu_custom_call.1} parent=43 // pred_fallthru
          _
        // Predicated region
        $region53: #{tpu_custom_call.1} parent=43 // pred_check
          %p291 = pneg %p88
        $region54: #{tpu_custom_call.1} parent=43 // pred_check_branch
          %293 = sbr.rel (%p291) target = $region56
        $region55: #{tpu_custom_call.1} parent=43 // pred_region
          %294 = dma.done [#allocation7], 7168
        $region56: #{tpu_custom_call.1} parent=43 // pred_fallthru
          _
        // Predicated region
        $region57: #{tpu_custom_call.1} parent=43 // pred_check
          %p295 = pneg %p109
        $region58: #{tpu_custom_call.1} parent=43 // pred_check_branch
          %297 = sbr.rel (%p295) target = $region60
        $region59: #{tpu_custom_call.1} parent=43 // pred_region
          %298 = dma.done [#allocation10], 6144
        $region60: #{tpu_custom_call.1} parent=43 // pred_fallthru
          _
        // Predicated region
        $region61: #{tpu_custom_call.1} parent=43 // pred_check
          %p299 = pneg %p130
        $region62: #{tpu_custom_call.1} parent=43 // pred_check_branch
          %301 = sbr.rel (%p299) target = $region64
        $region63: #{tpu_custom_call.1} parent=43 // pred_region
          %302 = dma.done [#allocation10], 128
        $region64: #{tpu_custom_call.1} parent=43 // pred_fallthru
          _
        %s303 = sand.u32 %s33, 1
        %s304 = scalar_lea.sflag [#allocation4], %s303
        %s305 = sand.u32 %s33, 1
        %s306 = smul.addr %s305, 192
        %s307 = scalar_lea.vmem [#allocation3], %s306
        %p308 = pneg %p46
        %p309 = pneg %p43
        %p310 = pneg %p67
        %p311 = pneg %p64
        %p312 = pneg %p88
        %p313 = pneg %p85
        %p314 = pneg %p109
        %p315 = pneg %p106
        %p316 = pneg %p130
        %p317 = pneg %p127
        %p318 = pneg %p151
        %p319 = pneg %p148
        %p320 = pneg %p177
        %p321 = pneg %p174
        %s322 = sand.u32 %s164, 1
        %s323 = scalar_lea.sflag [#allocation5], %s322
        %s324 = sand.u32 %s164, 1
        %s325 = smul.addr %s324, 192
        %s326 = scalar_lea.vmem [#allocation12], %s325
        %s327 = smul.u32 2, %s25
        %s328 = smul.u32 2, %s25
        %v330 = vld [vmem:[#allocation11] sm:$0x1]
        %v331 = vld [vmem:[#allocation11 + $0x1] sm:$0x1]
        %v332 = vld [vmem:[#allocation11 + $0x2] sm:$0x1]
        %v333 = vld [vmem:[#allocation11 + $0x3] sm:$0x1]
        %v334 = vld [vmem:[#allocation11 + $0x4] sm:$0x1]
        %v335 = vld [vmem:[%s5] ss:$2 sm:$0x3f]
        %s336 = scalar_lea.vmem %s5, 1
        %v337 = vld [vmem:[%s336] ss:$2 sm:$0x3f]
        %v338 = vld [vmem:[%s282] sm:$0xff]
        %v339 = vld [vmem:[%s282 + $0x8] sm:$0xff]
        %v340 = vld [vmem:[%s282 + $0x10] sm:$0xff]
        %v341 = vld [vmem:[%s282 + $0x18] sm:$0xff]
        %v342 = vld [vmem:[%s282 + $0x20] sm:$0xff]
        %v343 = vld [vmem:[%s282 + $0x28] sm:$0xff]
        %v344 = vld [vmem:[%s282 + $0x30] sm:$0xff]
        %v345 = vld [vmem:[%s282 + $0x38] sm:$0xff]
        %v346 = vld [vmem:[%s282 + $0x40] sm:$0xff]
        %v347 = vld [vmem:[%s282 + $0x48] sm:$0xff]
        %v348 = vld [vmem:[%s282 + $0x50] sm:$0xff]
        %v349 = vld [vmem:[%s282 + $0x58] sm:$0xff]
        %v350 = vld [vmem:[%s282 + $0x60] sm:$0xff]
        %v351 = vld [vmem:[%s282 + $0x68] sm:$0xff]
        %v352 = vld [vmem:[%s282 + $0x70] sm:$0xff]
        %v353 = vld [vmem:[%s282 + $0x78] sm:$0xff]
        %v354 = vld [vmem:[%s282 + $0x80] sm:$0xff]
        %v355 = vld [vmem:[%s282 + $0x88] sm:$0xff]
        %v356 = vld [vmem:[%s282 + $0x90] sm:$0xff]
        %v357 = vld [vmem:[%s282 + $0x98] sm:$0xff]
        %v358 = vld [vmem:[%s282 + $0xa0] sm:$0xff]
        %v359 = vld [vmem:[%s282 + $0xa8] sm:$0xff]
        %v360 = vld [vmem:[%s282 + $0xb0] sm:$0xff]
        %v361 = vld [vmem:[%s282 + $0xb8] sm:$0xff]
        %v362 = vpack.c.bf16 %v344, %v338
        %v363 = vpack.c.bf16 %v345, %v339
        %v364 = vpack.c.bf16 %v346, %v340
        %v365 = vpack.c.bf16 %v347, %v341
        %v366 = vpack.c.bf16 %v348, %v342
        %v367 = vpack.c.bf16 %v349, %v343
        %v368 = vpack.c.bf16 %v356, %v350
        %v369 = vpack.c.bf16 %v357, %v351
        %v370 = vpack.c.bf16 %v358, %v352
        %v371 = vpack.c.bf16 %v359, %v353
        %v372 = vpack.c.bf16 %v360, %v354
        %v373 = vpack.c.bf16 %v361, %v355
        %v374 = vld [vmem:[#allocation6] sm:$0xf]
        %v375 = vld [vmem:[#allocation6 + $0x4] sm:$0xf]
        %v376 = vld [vmem:[#allocation6 + $0x8] sm:$0xf]
        %v377 = vld [vmem:[#allocation6 + $0xc] sm:$0xf]
        %v378 = vld [vmem:[#allocation6 + $0x10] sm:$0xf]
        %v379 = vld [vmem:[#allocation6 + $0x14] sm:$0xf]
        %v380 = vld [vmem:[#allocation6 + $0x18] sm:$0xf]
        %v381 = vld [vmem:[#allocation6 + $0x1c] sm:$0xf]
        %v382 = vld [vmem:[#allocation6 + $0x20] sm:$0xf]
        %v383 = vld [vmem:[#allocation6 + $0x24] sm:$0xf]
        %v384 = vld [vmem:[#allocation6 + $0x28] sm:$0xf]
        %v385 = vld [vmem:[#allocation6 + $0x2c] sm:$0xf]
        %v386 = vld [vmem:[#allocation6 + $0x30] sm:$0xf]
        %v387 = vld [vmem:[#allocation6 + $0x34] sm:$0xf]
        %v388 = vld [vmem:[#allocation6 + $0x38] sm:$0xf]
        %v389 = vld [vmem:[#allocation6 + $0x3c] sm:$0xf]
        %v390 = vld [vmem:[#allocation6 + $0x40] sm:$0xf]
        %v391 = vld [vmem:[#allocation6 + $0x44] sm:$0xf]
        %v392 = vld [vmem:[#allocation6 + $0x48] sm:$0xf]
        %v393 = vld [vmem:[#allocation6 + $0x4c] sm:$0xf]
        %v394 = vld [vmem:[#allocation6 + $0x50] sm:$0xf]
        %v395 = vld [vmem:[#allocation6 + $0x54] sm:$0xf]
        %v396 = vld [vmem:[#allocation6 + $0x58] sm:$0xf]
        %v397 = vld [vmem:[#allocation6 + $0x5c] sm:$0xf]
        %v398 = vld [vmem:[#allocation6 + $0x60] sm:$0xf]
        %v399 = vld [vmem:[#allocation6 + $0x64] sm:$0xf]
        %v400 = vld [vmem:[#allocation6 + $0x68] sm:$0xf]
        %v401 = vld [vmem:[#allocation6 + $0x6c] sm:$0xf]
        %v402 = vld [vmem:[#allocation6 + $0x70] sm:$0xf]
        %v403 = vld [vmem:[#allocation6 + $0x74] sm:$0xf]
        %v404 = vld [vmem:[#allocation6 + $0x78] sm:$0xf]
        %v405 = vld [vmem:[#allocation6 + $0x7c] sm:$0xf]
        %v406 = vld [vmem:[#allocation6 + $0x80] sm:$0xf]
        %v407 = vld [vmem:[#allocation6 + $0x84] sm:$0xf]
        %v408 = vld [vmem:[#allocation6 + $0x88] sm:$0xf]
        %v409 = vld [vmem:[#allocation6 + $0x8c] sm:$0xf]
        %v410 = vld [vmem:[#allocation6 + $0x90] sm:$0xf]
        %v411 = vld [vmem:[#allocation6 + $0x94] sm:$0xf]
        %v412 = vld [vmem:[#allocation6 + $0x98] sm:$0xf]
        %v413 = vld [vmem:[#allocation6 + $0x9c] sm:$0xf]
        %v414 = vld [vmem:[#allocation6 + $0xa0] sm:$0xf]
        %v415 = vld [vmem:[#allocation6 + $0xa4] sm:$0xf]
        %v416 = vld [vmem:[#allocation6 + $0xa8] sm:$0xf]
        %v417 = vld [vmem:[#allocation6 + $0xac] sm:$0xf]
        %v418 = vld [vmem:[#allocation6 + $0xb0] sm:$0xf]
        %v419 = vld [vmem:[#allocation6 + $0xb4] sm:$0xf]
        %v420 = vld [vmem:[#allocation6 + $0xb8] sm:$0xf]
        %v421 = vld [vmem:[#allocation6 + $0xbc] sm:$0xf]
        %v422 = vld [vmem:[#allocation6 + $0xc0] sm:$0xf]
        %v423 = vld [vmem:[#allocation6 + $0xc4] sm:$0xf]
        %v424 = vld [vmem:[#allocation6 + $0xc8] sm:$0xf]
        %v425 = vld [vmem:[#allocation6 + $0xcc] sm:$0xf]
        %v426 = vld [vmem:[#allocation6 + $0xd0] sm:$0xf]
        %v427 = vld [vmem:[#allocation6 + $0xd4] sm:$0xf]
        %v428 = vld [vmem:[#allocation6 + $0xd8] sm:$0xf]
        %v429 = vld [vmem:[#allocation6 + $0xdc] sm:$0xf]
        %v430 = vld [vmem:[#allocation6 + $0xe0] sm:$0xf]
        %v431 = vld [vmem:[#allocation6 + $0xe4] sm:$0xf]
        %v432 = vld [vmem:[#allocation6 + $0xe8] sm:$0xf]
        %v433 = vld [vmem:[#allocation6 + $0xec] sm:$0xf]
        %v434 = vld [vmem:[#allocation6 + $0xf0] sm:$0xf]
        %v435 = vld [vmem:[#allocation6 + $0xf4] sm:$0xf]
        %v436 = vld [vmem:[#allocation6 + $0xf8] sm:$0xf]
        %v437 = vld [vmem:[#allocation6 + $0xfc] sm:$0xf]
        %v438 = vld [vmem:[#allocation6 + $0x100] sm:$0xf]
        %v439 = vld [vmem:[#allocation6 + $0x104] sm:$0xf]
        %v440 = vld [vmem:[#allocation6 + $0x108] sm:$0xf]
        %v441 = vld [vmem:[#allocation6 + $0x10c] sm:$0xf]
        %v442 = vld [vmem:[#allocation6 + $0x110] sm:$0xf]
        %v443 = vld [vmem:[#allocation6 + $0x114] sm:$0xf]
        %v444 = vld [vmem:[#allocation6 + $0x118] sm:$0xf]
        %v445 = vld [vmem:[#allocation6 + $0x11c] sm:$0xf]
        %v446 = vld [vmem:[#allocation6 + $0x120] sm:$0xf]
        %v447 = vld [vmem:[#allocation6 + $0x124] sm:$0xf]
        %v448 = vld [vmem:[#allocation6 + $0x128] sm:$0xf]
        %v449 = vld [vmem:[#allocation6 + $0x12c] sm:$0xf]
        %v450 = vld [vmem:[#allocation6 + $0x130] sm:$0xf]
        %v451 = vld [vmem:[#allocation6 + $0x134] sm:$0xf]
        %v452 = vld [vmem:[#allocation6 + $0x138] sm:$0xf]
        %v453 = vld [vmem:[#allocation6 + $0x13c] sm:$0xf]
        %v454 = vld [vmem:[#allocation6 + $0x140] sm:$0xf]
        %v455 = vld [vmem:[#allocation6 + $0x144] sm:$0xf]
        %v456 = vld [vmem:[#allocation6 + $0x148] sm:$0xf]
        %v457 = vld [vmem:[#allocation6 + $0x14c] sm:$0xf]
        %v458 = vld [vmem:[#allocation6 + $0x150] sm:$0xf]
        %v459 = vld [vmem:[#allocation6 + $0x154] sm:$0xf]
        %v460 = vld [vmem:[#allocation6 + $0x158] sm:$0xf]
        %v461 = vld [vmem:[#allocation6 + $0x15c] sm:$0xf]
        %v462 = vld [vmem:[#allocation6 + $0x160] sm:$0xf]
        %v463 = vld [vmem:[#allocation6 + $0x164] sm:$0xf]
        %v464 = vld [vmem:[#allocation6 + $0x168] sm:$0xf]
        %v465 = vld [vmem:[#allocation6 + $0x16c] sm:$0xf]
        %v466 = vld [vmem:[#allocation6 + $0x170] sm:$0xf]
        %v467 = vld [vmem:[#allocation6 + $0x174] sm:$0xf]
        %v468 = vld [vmem:[#allocation6 + $0x178] sm:$0xf]
        %v469 = vld [vmem:[#allocation6 + $0x17c] sm:$0xf]
        %v566 = vunpack.c.l.b16 %v374
        %v567 = vunpack.c.l.b16 %v375
        %v568 = vunpack.c.l.b16 %v376
        %v569 = vunpack.c.l.b16 %v377
        %v570 = vunpack.c.l.b16 %v378
        %v571 = vunpack.c.l.b16 %v379
        %v572 = vunpack.c.l.b16 %v380
        %v573 = vunpack.c.l.b16 %v381
        %v574 = vunpack.c.l.b16 %v382
        %v575 = vunpack.c.l.b16 %v383
        %v576 = vunpack.c.l.b16 %v384
        %v577 = vunpack.c.l.b16 %v385
        %v578 = vunpack.c.l.b16 %v386
        %v579 = vunpack.c.l.b16 %v387
        %v580 = vunpack.c.l.b16 %v388
        %v581 = vunpack.c.l.b16 %v389
        %v582 = vunpack.c.l.b16 %v390
        %v583 = vunpack.c.l.b16 %v391
        %v584 = vunpack.c.l.b16 %v392
        %v585 = vunpack.c.l.b16 %v393
        %v586 = vunpack.c.l.b16 %v394
        %v587 = vunpack.c.l.b16 %v395
        %v588 = vunpack.c.l.b16 %v396
        %v589 = vunpack.c.l.b16 %v397
        %v590 = vunpack.c.l.b16 %v398
        %v591 = vunpack.c.l.b16 %v399
        %v592 = vunpack.c.l.b16 %v400
        %v593 = vunpack.c.l.b16 %v401
        %v594 = vunpack.c.l.b16 %v402
        %v595 = vunpack.c.l.b16 %v403
        %v596 = vunpack.c.l.b16 %v404
        %v597 = vunpack.c.l.b16 %v405
        %v598 = vunpack.c.l.b16 %v406
        %v599 = vunpack.c.l.b16 %v407
        %v600 = vunpack.c.l.b16 %v408
        %v601 = vunpack.c.l.b16 %v409
        %v602 = vunpack.c.l.b16 %v410
        %v603 = vunpack.c.l.b16 %v411
        %v604 = vunpack.c.l.b16 %v412
        %v605 = vunpack.c.l.b16 %v413
        %v606 = vunpack.c.l.b16 %v414
        %v607 = vunpack.c.l.b16 %v415
        %v608 = vunpack.c.l.b16 %v416
        %v609 = vunpack.c.l.b16 %v417
        %v610 = vunpack.c.l.b16 %v418
        %v611 = vunpack.c.l.b16 %v419
        %v612 = vunpack.c.l.b16 %v420
        %v613 = vunpack.c.l.b16 %v421
        %v614 = vunpack.c.l.b16 %v422
        %v615 = vunpack.c.l.b16 %v423
        %v616 = vunpack.c.l.b16 %v424
        %v617 = vunpack.c.l.b16 %v425
        %v618 = vunpack.c.l.b16 %v426
        %v619 = vunpack.c.l.b16 %v427
        %v620 = vunpack.c.l.b16 %v428
        %v621 = vunpack.c.l.b16 %v429
        %v622 = vunpack.c.l.b16 %v430
        %v623 = vunpack.c.l.b16 %v431
        %v624 = vunpack.c.l.b16 %v432
        %v625 = vunpack.c.l.b16 %v433
        %v626 = vunpack.c.l.b16 %v434
        %v627 = vunpack.c.l.b16 %v435
        %v628 = vunpack.c.l.b16 %v436
        %v629 = vunpack.c.l.b16 %v437
        %v630 = vunpack.c.l.b16 %v438
        %v631 = vunpack.c.l.b16 %v439
        %v632 = vunpack.c.l.b16 %v440
        %v633 = vunpack.c.l.b16 %v441
        %v634 = vunpack.c.l.b16 %v442
        %v635 = vunpack.c.l.b16 %v443
        %v636 = vunpack.c.l.b16 %v444
        %v637 = vunpack.c.l.b16 %v445
        %v638 = vunpack.c.l.b16 %v446
        %v639 = vunpack.c.l.b16 %v447
        %v640 = vunpack.c.l.b16 %v448
        %v641 = vunpack.c.l.b16 %v449
        %v642 = vunpack.c.l.b16 %v450
        %v643 = vunpack.c.l.b16 %v451
        %v644 = vunpack.c.l.b16 %v452
        %v645 = vunpack.c.l.b16 %v453
        %v646 = vunpack.c.l.b16 %v454
        %v647 = vunpack.c.l.b16 %v455
        %v648 = vunpack.c.l.b16 %v456
        %v649 = vunpack.c.l.b16 %v457
        %v650 = vunpack.c.l.b16 %v458
        %v651 = vunpack.c.l.b16 %v459
        %v652 = vunpack.c.l.b16 %v460
        %v653 = vunpack.c.l.b16 %v461
        %v654 = vunpack.c.l.b16 %v462
        %v655 = vunpack.c.l.b16 %v463
        %v656 = vunpack.c.l.b16 %v464
        %v657 = vunpack.c.l.b16 %v465
        %v658 = vunpack.c.l.b16 %v466
        %v659 = vunpack.c.l.b16 %v467
        %v660 = vunpack.c.l.b16 %v468
        %v661 = vunpack.c.l.b16 %v469
        %v662 = vpack.c.b16 %v567, %v566
        %v663 = vpack.c.b16 %v569, %v568
        %v664 = vpack.c.b16 %v571, %v570
        %v665 = vpack.c.b16 %v573, %v572
        %v666 = vpack.c.b16 %v575, %v574
        %v667 = vpack.c.b16 %v577, %v576
        %v668 = vpack.c.b16 %v579, %v578
        %v669 = vpack.c.b16 %v581, %v580
        %v670 = vpack.c.b16 %v583, %v582
        %v671 = vpack.c.b16 %v585, %v584
        %v672 = vpack.c.b16 %v587, %v586
        %v673 = vpack.c.b16 %v589, %v588
        %v674 = vpack.c.b16 %v591, %v590
        %v675 = vpack.c.b16 %v593, %v592
        %v676 = vpack.c.b16 %v595, %v594
        %v677 = vpack.c.b16 %v597, %v596
        %v678 = vpack.c.b16 %v599, %v598
        %v679 = vpack.c.b16 %v601, %v600
        %v680 = vpack.c.b16 %v603, %v602
        %v681 = vpack.c.b16 %v605, %v604
        %v682 = vpack.c.b16 %v607, %v606
        %v683 = vpack.c.b16 %v609, %v608
        %v684 = vpack.c.b16 %v611, %v610
        %v685 = vpack.c.b16 %v613, %v612
        %v686 = vpack.c.b16 %v615, %v614
        %v687 = vpack.c.b16 %v617, %v616
        %v688 = vpack.c.b16 %v619, %v618
        %v689 = vpack.c.b16 %v621, %v620
        %v690 = vpack.c.b16 %v623, %v622
        %v691 = vpack.c.b16 %v625, %v624
        %v692 = vpack.c.b16 %v627, %v626
        %v693 = vpack.c.b16 %v629, %v628
        %v694 = vpack.c.b16 %v631, %v630
        %v695 = vpack.c.b16 %v633, %v632
        %v696 = vpack.c.b16 %v635, %v634
        %v697 = vpack.c.b16 %v637, %v636
        %v698 = vpack.c.b16 %v639, %v638
        %v699 = vpack.c.b16 %v641, %v640
        %v700 = vpack.c.b16 %v643, %v642
        %v701 = vpack.c.b16 %v645, %v644
        %v702 = vpack.c.b16 %v647, %v646
        %v703 = vpack.c.b16 %v649, %v648
        %v704 = vpack.c.b16 %v651, %v650
        %v705 = vpack.c.b16 %v653, %v652
        %v706 = vpack.c.b16 %v655, %v654
        %v707 = vpack.c.b16 %v657, %v656
        %v708 = vpack.c.b16 %v659, %v658
        %v709 = vpack.c.b16 %v661, %v660
        %758 = vmatprep.subr.bf16.mxu0 0
        %759 = vmatpush1.bf16.msra.mxu0 %v662
        %760 = vmatprep.subr.bf16.mxu0 0
        %761 = vmatpush1.bf16.msra.mxu0 %v663
        %762 = vmatprep.subr.bf16.mxu0 0
        %763 = vmatpush1.bf16.msra.mxu0 %v664
        %764 = vmatprep.subr.bf16.mxu0 0
        %765 = vmatpush1.bf16.msra.mxu0 %v665
        %766 = vmatprep.subr.bf16.mxu0 0
        %767 = vmatpush1.bf16.msra.mxu0 %v666
        %768 = vmatprep.subr.bf16.mxu0 0
        %769 = vmatpush1.bf16.msra.mxu0 %v667
        %770 = vmatprep.subr.bf16.mxu0 0
        %771 = vmatpush1.bf16.msra.mxu0 %v668
        %772 = vmatprep.subr.bf16.mxu0 0
        %773 = vmatpush1.bf16.msra.mxu0 %v669
        %774 = vmatprep.subr.bf16.mxu0 0
        %775 = vmatpush1.bf16.msra.mxu0 %v670
        %776 = vmatprep.subr.bf16.mxu0 0
        %777 = vmatpush1.bf16.msra.mxu0 %v671
        %778 = vmatprep.subr.bf16.mxu0 0
        %779 = vmatpush1.bf16.msra.mxu0 %v672
        %780 = vmatprep.subr.bf16.mxu0 0
        %781 = vmatpush1.bf16.msra.mxu0 %v673
        %782 = vmatprep.subr.bf16.mxu0 0
        %783 = vmatpush1.bf16.msra.mxu0 %v674
        %784 = vmatprep.subr.bf16.mxu0 0
        %785 = vmatpush1.bf16.msra.mxu0 %v675
        %786 = vmatprep.subr.bf16.mxu0 0
        %787 = vmatpush1.bf16.msra.mxu0 %v676
        %788 = vmatprep.subr.bf16.mxu0 0
        %789 = vmatpush1.bf16.msra.mxu0 %v677
        %790 = vmatprep.mubr.bf16.mxu0 %v363
        %791 = vmatmul.mubr.bf16.gmra.mrb[0].mxu0 %v362
        %v792 = vpop.f32.mrb[0].mxu0
        %v793 = vadd.f32 0.0, %v792
        %v794 = vpop.f32.mrb[0].mxu0
        %v795 = vpop.f32.mrb[0].mxu0
        %v796 = vadd.f32 0.0, %v795
        %v797 = vpop.f32.mrb[0].mxu0
        %798 = vmatprep.mubr.bf16.mxu0 %v369
        %799 = vmatmul.mubr.bf16.gmra.mrb[0].mxu0 %v368
        %v800 = vpop.f32.mrb[0].mxu0
        %v801 = vadd.f32 0.0, %v800
        %v802 = vpop.f32.mrb[0].mxu0
        %v803 = vpop.f32.mrb[0].mxu0
        %v804 = vadd.f32 0.0, %v803
        %v805 = vpop.f32.mrb[0].mxu0
        %806 = vdwg.mxu0
        %807 = vmatprep.subr.bf16.mxu0 0
        %808 = vmatpush1.bf16.msra.mxu0 %v678
        %809 = vmatprep.subr.bf16.mxu0 0
        %810 = vmatpush1.bf16.msra.mxu0 %v679
        %811 = vmatprep.subr.bf16.mxu0 0
        %812 = vmatpush1.bf16.msra.mxu0 %v680
        %813 = vmatprep.subr.bf16.mxu0 0
        %814 = vmatpush1.bf16.msra.mxu0 %v681
        %815 = vmatprep.subr.bf16.mxu0 0
        %816 = vmatpush1.bf16.msra.mxu0 %v682
        %817 = vmatprep.subr.bf16.mxu0 0
        %818 = vmatpush1.bf16.msra.mxu0 %v683
        %819 = vmatprep.subr.bf16.mxu0 0
        %820 = vmatpush1.bf16.msra.mxu0 %v684
        %821 = vmatprep.subr.bf16.mxu0 0
        %822 = vmatpush1.bf16.msra.mxu0 %v685
        %823 = vmatprep.subr.bf16.mxu0 0
        %824 = vmatpush1.bf16.msra.mxu0 %v686
        %825 = vmatprep.subr.bf16.mxu0 0
        %826 = vmatpush1.bf16.msra.mxu0 %v687
        %827 = vmatprep.subr.bf16.mxu0 0
        %828 = vmatpush1.bf16.msra.mxu0 %v688
        %829 = vmatprep.subr.bf16.mxu0 0
        %830 = vmatpush1.bf16.msra.mxu0 %v689
        %831 = vmatprep.subr.bf16.mxu0 0
        %832 = vmatpush1.bf16.msra.mxu0 %v690
        %833 = vmatprep.subr.bf16.mxu0 0
        %834 = vmatpush1.bf16.msra.mxu0 %v691
        %835 = vmatprep.subr.bf16.mxu0 0
        %836 = vmatpush1.bf16.msra.mxu0 %v692
        %837 = vmatprep.subr.bf16.mxu0 0
        %838 = vmatpush1.bf16.msra.mxu0 %v693
        %839 = vmatprep.mubr.bf16.mxu0 %v365
        %840 = vmatmul.mubr.bf16.gmra.mrb[0].mxu0 %v364
        %v841 = vpop.f32.mrb[0].mxu0
        %v842 = vadd.f32 %v793, %v841
        %v843 = vpop.f32.mrb[0].mxu0
        %v844 = vpop.f32.mrb[0].mxu0
        %v845 = vadd.f32 %v796, %v844
        %v846 = vpop.f32.mrb[0].mxu0
        %847 = vmatprep.mubr.bf16.mxu0 %v371
        %848 = vmatmul.mubr.bf16.gmra.mrb[0].mxu0 %v370
        %v849 = vpop.f32.mrb[0].mxu0
        %v850 = vadd.f32 %v801, %v849
        %v851 = vpop.f32.mrb[0].mxu0
        %v852 = vpop.f32.mrb[0].mxu0
        %v853 = vadd.f32 %v804, %v852
        %v854 = vpop.f32.mrb[0].mxu0
        %855 = vdwg.mxu0
        %856 = vmatprep.subr.bf16.mxu0 0
        %857 = vmatpush1.bf16.msra.mxu0 %v694
        %858 = vmatprep.subr.bf16.mxu0 0
        %859 = vmatpush1.bf16.msra.mxu0 %v695
        %860 = vmatprep.subr.bf16.mxu0 0
        %861 = vmatpush1.bf16.msra.mxu0 %v696
        %862 = vmatprep.subr.bf16.mxu0 0
        %863 = vmatpush1.bf16.msra.mxu0 %v697
        %864 = vmatprep.subr.bf16.mxu0 0
        %865 = vmatpush1.bf16.msra.mxu0 %v698
        %866 = vmatprep.subr.bf16.mxu0 0
        %867 = vmatpush1.bf16.msra.mxu0 %v699
        %868 = vmatprep.subr.bf16.mxu0 0
        %869 = vmatpush1.bf16.msra.mxu0 %v700
        %870 = vmatprep.subr.bf16.mxu0 0
        %871 = vmatpush1.bf16.msra.mxu0 %v701
        %872 = vmatprep.subr.bf16.mxu0 0
        %873 = vmatpush1.bf16.msra.mxu0 %v702
        %874 = vmatprep.subr.bf16.mxu0 0
        %875 = vmatpush1.bf16.msra.mxu0 %v703
        %876 = vmatprep.subr.bf16.mxu0 0
        %877 = vmatpush1.bf16.msra.mxu0 %v704
        %878 = vmatprep.subr.bf16.mxu0 0
        %879 = vmatpush1.bf16.msra.mxu0 %v705
        %880 = vmatprep.subr.bf16.mxu0 0
        %881 = vmatpush1.bf16.msra.mxu0 %v706
        %882 = vmatprep.subr.bf16.mxu0 0
        %883 = vmatpush1.bf16.msra.mxu0 %v707
        %884 = vmatprep.subr.bf16.mxu0 0
        %885 = vmatpush1.bf16.msra.mxu0 %v708
        %886 = vmatprep.subr.bf16.mxu0 0
        %887 = vmatpush1.bf16.msra.mxu0 %v709
        %888 = vmatprep.mubr.bf16.mxu0 %v367
        %889 = vmatmul.mubr.bf16.gmra.mrb[0].mxu0 %v366
        %v890 = vpop.f32.mrb[0].mxu0
        %v891 = vadd.f32 %v842, %v890
        %v892 = vpop.f32.mrb[0].mxu0
        %v893 = vpop.f32.mrb[0].mxu0
        %v894 = vadd.f32 %v845, %v893
        %v895 = vpop.f32.mrb[0].mxu0
        %896 = vmatprep.mubr.bf16.mxu0 %v373
        %897 = vmatmul.mubr.bf16.gmra.mrb[0].mxu0 %v372
        %v898 = vpop.f32.mrb[0].mxu0
        %v899 = vadd.f32 %v850, %v898
        %v900 = vpop.f32.mrb[0].mxu0
        %v901 = vpop.f32.mrb[0].mxu0
        %v902 = vadd.f32 %v853, %v901
        %v903 = vpop.f32.mrb[0].mxu0
        %904 = vdwg.mxu0
        %v905 = vmul.f32 %v891, 0.5
        %v906 = vmul.f32 %v894, 0.5
        %v907 = vmul.f32 %v899, 0.5
        %v908 = vmul.f32 %v902, 0.5
        %v909 = vmul.f32 %v891, 0.044715
        %v910 = vmul.f32 %v894, 0.044715
        %v911 = vmul.f32 %v899, 0.044715
        %v912 = vmul.f32 %v902, 0.044715
        %v913 = vmul.f32 %v909, %v891
        %v914 = vmul.f32 %v910, %v894
        %v915 = vmul.f32 %v911, %v899
        %v916 = vmul.f32 %v912, %v902
        %v917 = vmul.f32 %v913, %v891
        %v918 = vmul.f32 %v914, %v894
        %v919 = vmul.f32 %v915, %v899
        %v920 = vmul.f32 %v916, %v902
        %v921 = vadd.f32 %v891, %v917
        %v922 = vadd.f32 %v894, %v918
        %v923 = vadd.f32 %v899, %v919
        %v924 = vadd.f32 %v902, %v920
        %v925 = vmul.f32 %v921, 0.7978846
        %v926 = vmul.f32 %v922, 0.7978846
        %v927 = vmul.f32 %v923, 0.7978846
        %v928 = vmul.f32 %v924, 0.7978846
        %v929 = vtanh.pop %v925
        %v930 = vtanh.pop %v926
        %v931 = vtanh.pop %v927
        %v932 = vtanh.pop %v928
        %v933 = vadd.f32 %v929, 1.0
        %v934 = vadd.f32 %v930, 1.0
        %v935 = vadd.f32 %v931, 1.0
        %v936 = vadd.f32 %v932, 1.0
        %v937 = vmul.f32 %v905, %v933
        %v938 = vmul.f32 %v906, %v934
        %v939 = vmul.f32 %v907, %v935
        %v940 = vmul.f32 %v908, %v936
        %v941 = vlaneseq
        %v942 = vshrl.u32 %v941, 7
        %v943 = vsub.s32 0, %v942
        %v944 = vrot.slane %v330, %v943
        %v945 = vmul.f32 %v937, %v944
        %v946 = vmul.f32 %v938, %v944
        %v947 = vmul.f32 %v939, %v944
        %v948 = vmul.f32 %v940, %v944
        %v949 = vlaneseq
        %v950 = vshrl.u32 %v949, 7
        %v951 = vsub.s32 0, %v950
        %v952 = vrot.slane %v331, %v951
        %v953 = vadd.f32 %v945, %v952
        %v954 = vadd.f32 %v946, %v952
        %v955 = vadd.f32 %v947, %v952
        %v956 = vadd.f32 %v948, %v952
        %957 = vst [vmem:[#allocation2 + $0x5] sm:$0x7] 0.0
        %958 = vst [vmem:[#allocation2 + $0x25] sm:$0x7] 0.0
        %959 = vst [vmem:[#allocation2 + $0x18] sm:$0x7] 0.0
        %960 = vst [vmem:[#allocation2 + $0x38] sm:$0x7] 0.0
        %961 = vst [vmem:[#allocation2 + $0x8] sm:$0xff] %v953
        %962 = vst [vmem:[#allocation2 + $0x10] sm:$0xff] %v954
        %963 = vst [vmem:[#allocation2 + $0x28] sm:$0xff] %v955
        %964 = vst [vmem:[#allocation2 + $0x30] sm:$0xff] %v956
        %v965 = vld [vmem:[#allocation2 + $0x5] sm:$0xff]
        %v966 = vld [vmem:[#allocation2 + $0xd] sm:$0xff]
        %v967 = vld [vmem:[#allocation2 + $0x25] sm:$0xff]
        %v968 = vld [vmem:[#allocation2 + $0x2d] sm:$0xff]
        %v969 = vld [vmem:[#allocation2 + $0x6] sm:$0xff]
        %v970 = vld [vmem:[#allocation2 + $0xe] sm:$0xff]
        %v971 = vld [vmem:[#allocation2 + $0x26] sm:$0xff]
        %v972 = vld [vmem:[#allocation2 + $0x2e] sm:$0xff]
        %v973 = vld [vmem:[#allocation2 + $0x7] sm:$0xff]
        %v974 = vld [vmem:[#allocation2 + $0xf] sm:$0xff]
        %v975 = vld [vmem:[#allocation2 + $0x27] sm:$0xff]
        %v976 = vld [vmem:[#allocation2 + $0x2f] sm:$0xff]
        %v977 = vld [vmem:[#allocation2 + $0x8] sm:$0xff]
        %v978 = vld [vmem:[#allocation2 + $0x10] sm:$0xff]
        %v979 = vld [vmem:[#allocation2 + $0x28] sm:$0xff]
        %v980 = vld [vmem:[#allocation2 + $0x30] sm:$0xff]
        %v981 = vld [vmem:[#allocation2 + $0x9] sm:$0xff]
        %v982 = vld [vmem:[#allocation2 + $0x11] sm:$0xff]
        %v983 = vld [vmem:[#allocation2 + $0x29] sm:$0xff]
        %v984 = vld [vmem:[#allocation2 + $0x31] sm:$0xff]
        %v985 = vld [vmem:[#allocation2 + $0xa] sm:$0xff]
        %v986 = vld [vmem:[#allocation2 + $0x12] sm:$0xff]
        %v987 = vld [vmem:[#allocation2 + $0x2a] sm:$0xff]
        %v988 = vld [vmem:[#allocation2 + $0x32] sm:$0xff]
        %v989 = vld [vmem:[#allocation2 + $0xb] sm:$0xff]
        %v990 = vld [vmem:[#allocation2 + $0x13] sm:$0xff]
        %v991 = vld [vmem:[#allocation2 + $0x2b] sm:$0xff]
        %v992 = vld [vmem:[#allocation2 + $0x33] sm:$0xff]
        %v993 = vpack.c.bf16 %v966, %v965
        %v994 = vpack.c.bf16 %v970, %v969
        %v995 = vpack.c.bf16 %v974, %v973
        %v996 = vpack.c.bf16 %v978, %v977
        %v997 = vpack.c.bf16 %v982, %v981
        %v998 = vpack.c.bf16 %v986, %v985
        %v999 = vpack.c.bf16 %v990, %v989
        %v1000 = vpack.c.bf16 %v968, %v967
        %v1001 = vpack.c.bf16 %v972, %v971
        %v1002 = vpack.c.bf16 %v976, %v975
        %v1003 = vpack.c.bf16 %v980, %v979
        %v1004 = vpack.c.bf16 %v984, %v983
        %v1005 = vpack.c.bf16 %v988, %v987
        %v1006 = vpack.c.bf16 %v992, %v991
        %v1007 = vld [vmem:[#allocation8] sm:$0xf]
        %v1008 = vld [vmem:[#allocation8 + $0x4] sm:$0xf]
        %v1009 = vld [vmem:[#allocation8 + $0x8] sm:$0xf]
        %v1010 = vld [vmem:[#allocation8 + $0xc] sm:$0xf]
        %v1011 = vld [vmem:[#allocation8 + $0x10] sm:$0xf]
        %v1012 = vld [vmem:[#allocation8 + $0x14] sm:$0xf]
        %v1013 = vld [vmem:[#allocation8 + $0x18] sm:$0xf]
        %v1014 = vld [vmem:[#allocation8 + $0x1c] sm:$0xf]
        %v1015 = vld [vmem:[#allocation8 + $0x20] sm:$0xf]
        %v1016 = vld [vmem:[#allocation8 + $0x24] sm:$0xf]
        %v1017 = vld [vmem:[#allocation8 + $0x28] sm:$0xf]
        %v1018 = vld [vmem:[#allocation8 + $0x2c] sm:$0xf]
        %v1019 = vld [vmem:[#allocation8 + $0x30] sm:$0xf]
        %v1020 = vld [vmem:[#allocation8 + $0x34] sm:$0xf]
        %v1021 = vld [vmem:[#allocation8 + $0x38] sm:$0xf]
        %v1022 = vld [vmem:[#allocation8 + $0x3c] sm:$0xf]
        %v1023 = vld [vmem:[#allocation8 + $0x40] sm:$0xf]
        %v1024 = vld [vmem:[#allocation8 + $0x44] sm:$0xf]
        %v1025 = vld [vmem:[#allocation8 + $0x48] sm:$0xf]
        %v1026 = vld [vmem:[#allocation8 + $0x4c] sm:$0xf]
        %v1027 = vld [vmem:[#allocation8 + $0x50] sm:$0xf]
        %v1028 = vld [vmem:[#allocation8 + $0x54] sm:$0xf]
        %v1029 = vld [vmem:[#allocation8 + $0x58] sm:$0xf]
        %v1030 = vld [vmem:[#allocation8 + $0x5c] sm:$0xf]
        %v1031 = vld [vmem:[#allocation8 + $0x60] sm:$0xf]
        %v1032 = vld [vmem:[#allocation8 + $0x64] sm:$0xf]
        %v1033 = vld [vmem:[#allocation8 + $0x68] sm:$0xf]
        %v1034 = vld [vmem:[#allocation8 + $0x6c] sm:$0xf]
        %v1035 = vld [vmem:[#allocation8 + $0x70] sm:$0xf]
        %v1036 = vld [vmem:[#allocation8 + $0x74] sm:$0xf]
        %v1037 = vld [vmem:[#allocation8 + $0x78] sm:$0xf]
        %v1038 = vld [vmem:[#allocation8 + $0x7c] sm:$0xf]
        %v1039 = vld [vmem:[#allocation8 + $0x80] sm:$0xf]
        %v1040 = vld [vmem:[#allocation8 + $0x84] sm:$0xf]
        %v1041 = vld [vmem:[#allocation8 + $0x88] sm:$0xf]
        %v1042 = vld [vmem:[#allocation8 + $0x8c] sm:$0xf]
        %v1043 = vld [vmem:[#allocation8 + $0x90] sm:$0xf]
        %v1044 = vld [vmem:[#allocation8 + $0x94] sm:$0xf]
        %v1045 = vld [vmem:[#allocation8 + $0x98] sm:$0xf]
        %v1046 = vld [vmem:[#allocation8 + $0x9c] sm:$0xf]
        %v1047 = vld [vmem:[#allocation8 + $0xa0] sm:$0xf]
        %v1048 = vld [vmem:[#allocation8 + $0xa4] sm:$0xf]
        %v1049 = vld [vmem:[#allocation8 + $0xa8] sm:$0xf]
        %v1050 = vld [vmem:[#allocation8 + $0xac] sm:$0xf]
        %v1051 = vld [vmem:[#allocation8 + $0xb0] sm:$0xf]
        %v1052 = vld [vmem:[#allocation8 + $0xb4] sm:$0xf]
        %v1053 = vld [vmem:[#allocation8 + $0xb8] sm:$0xf]
        %v1054 = vld [vmem:[#allocation8 + $0xbc] sm:$0xf]
        %v1055 = vld [vmem:[#allocation8 + $0xc0] sm:$0xf]
        %v1056 = vld [vmem:[#allocation8 + $0xc4] sm:$0xf]
        %v1057 = vld [vmem:[#allocation8 + $0xc8] sm:$0xf]
        %v1058 = vld [vmem:[#allocation8 + $0xcc] sm:$0xf]
        %v1059 = vld [vmem:[#allocation8 + $0xd0] sm:$0xf]
        %v1060 = vld [vmem:[#allocation8 + $0xd4] sm:$0xf]
        %v1061 = vld [vmem:[#allocation8 + $0xd8] sm:$0xf]
        %v1062 = vld [vmem:[#allocation8 + $0xdc] sm:$0xf]
        %v1063 = vld [vmem:[#allocation8 + $0xe0] sm:$0xf]
        %v1064 = vld [vmem:[#allocation8 + $0xe4] sm:$0xf]
        %v1065 = vld [vmem:[#allocation8 + $0xe8] sm:$0xf]
        %v1066 = vld [vmem:[#allocation8 + $0xec] sm:$0xf]
        %v1067 = vld [vmem:[#allocation8 + $0xf0] sm:$0xf]
        %v1068 = vld [vmem:[#allocation8 + $0xf4] sm:$0xf]
        %v1069 = vld [vmem:[#allocation8 + $0xf8] sm:$0xf]
        %v1070 = vld [vmem:[#allocation8 + $0xfc] sm:$0xf]
        %v1071 = vld [vmem:[#allocation8 + $0x100] sm:$0xf]
        %v1072 = vld [vmem:[#allocation8 + $0x104] sm:$0xf]
        %v1073 = vld [vmem:[#allocation8 + $0x108] sm:$0xf]
        %v1074 = vld [vmem:[#allocation8 + $0x10c] sm:$0xf]
        %v1075 = vld [vmem:[#allocation8 + $0x110] sm:$0xf]
        %v1076 = vld [vmem:[#allocation8 + $0x114] sm:$0xf]
        %v1077 = vld [vmem:[#allocation8 + $0x118] sm:$0xf]
        %v1078 = vld [vmem:[#allocation8 + $0x11c] sm:$0xf]
        %v1079 = vld [vmem:[#allocation8 + $0x120] sm:$0xf]
        %v1080 = vld [vmem:[#allocation8 + $0x124] sm:$0xf]
        %v1081 = vld [vmem:[#allocation8 + $0x128] sm:$0xf]
        %v1082 = vld [vmem:[#allocation8 + $0x12c] sm:$0xf]
        %v1083 = vld [vmem:[#allocation8 + $0x130] sm:$0xf]
        %v1084 = vld [vmem:[#allocation8 + $0x134] sm:$0xf]
        %v1085 = vld [vmem:[#allocation8 + $0x138] sm:$0xf]
        %v1086 = vld [vmem:[#allocation8 + $0x13c] sm:$0xf]
        %v1087 = vld [vmem:[#allocation8 + $0x140] sm:$0xf]
        %v1088 = vld [vmem:[#allocation8 + $0x144] sm:$0xf]
        %v1089 = vld [vmem:[#allocation8 + $0x148] sm:$0xf]
        %v1090 = vld [vmem:[#allocation8 + $0x14c] sm:$0xf]
        %v1091 = vld [vmem:[#allocation8 + $0x150] sm:$0xf]
        %v1092 = vld [vmem:[#allocation8 + $0x154] sm:$0xf]
        %v1093 = vld [vmem:[#allocation8 + $0x158] sm:$0xf]
        %v1094 = vld [vmem:[#allocation8 + $0x15c] sm:$0xf]
        %v1095 = vld [vmem:[#allocation8 + $0x160] sm:$0xf]
        %v1096 = vld [vmem:[#allocation8 + $0x164] sm:$0xf]
        %v1097 = vld [vmem:[#allocation8 + $0x168] sm:$0xf]
        %v1098 = vld [vmem:[#allocation8 + $0x16c] sm:$0xf]
        %v1099 = vld [vmem:[#allocation8 + $0x170] sm:$0xf]
        %v1100 = vld [vmem:[#allocation8 + $0x174] sm:$0xf]
        %v1101 = vld [vmem:[#allocation8 + $0x178] sm:$0xf]
        %v1102 = vld [vmem:[#allocation8 + $0x17c] sm:$0xf]
        %v1103 = vld [vmem:[#allocation8 + $0x180] sm:$0xf]
        %v1104 = vld [vmem:[#allocation8 + $0x184] sm:$0xf]
        %v1105 = vld [vmem:[#allocation8 + $0x188] sm:$0xf]
        %v1106 = vld [vmem:[#allocation8 + $0x18c] sm:$0xf]
        %v1107 = vld [vmem:[#allocation8 + $0x190] sm:$0xf]
        %v1108 = vld [vmem:[#allocation8 + $0x194] sm:$0xf]
        %v1109 = vld [vmem:[#allocation8 + $0x198] sm:$0xf]
        %v1110 = vld [vmem:[#allocation8 + $0x19c] sm:$0xf]
        %v1111 = vld [vmem:[#allocation8 + $0x1a0] sm:$0xf]
        %v1112 = vld [vmem:[#allocation8 + $0x1a4] sm:$0xf]
        %v1113 = vld [vmem:[#allocation8 + $0x1a8] sm:$0xf]
        %v1114 = vld [vmem:[#allocation8 + $0x1ac] sm:$0xf]
        %v1115 = vld [vmem:[#allocation8 + $0x1b0] sm:$0xf]
        %v1116 = vld [vmem:[#allocation8 + $0x1b4] sm:$0xf]
        %v1117 = vld [vmem:[#allocation8 + $0x1b8] sm:$0xf]
        %v1118 = vld [vmem:[#allocation8 + $0x1bc] sm:$0xf]
        %v1119 = vlaneseq
        %v1120 = vshrl.u32 %v1119, 7
        %v1121 = vsub.s32 0, %v1120
        %v1122 = vrot.slane %v332, %v1121
        %v1235 = vunpack.c.l.b16 %v1007
        %v1236 = vunpack.c.l.b16 %v1008
        %v1237 = vunpack.c.l.b16 %v1009
        %v1238 = vunpack.c.l.b16 %v1010
        %v1239 = vunpack.c.l.b16 %v1011
        %v1240 = vunpack.c.l.b16 %v1012
        %v1241 = vunpack.c.l.b16 %v1013
        %v1242 = vunpack.c.l.b16 %v1014
        %v1243 = vunpack.c.l.b16 %v1015
        %v1244 = vunpack.c.l.b16 %v1016
        %v1245 = vunpack.c.l.b16 %v1017
        %v1246 = vunpack.c.l.b16 %v1018
        %v1247 = vunpack.c.l.b16 %v1019
        %v1248 = vunpack.c.l.b16 %v1020
        %v1249 = vunpack.c.l.b16 %v1021
        %v1250 = vunpack.c.l.b16 %v1022
        %v1251 = vunpack.c.l.b16 %v1023
        %v1252 = vunpack.c.l.b16 %v1024
        %v1253 = vunpack.c.l.b16 %v1025
        %v1254 = vunpack.c.l.b16 %v1026
        %v1255 = vunpack.c.l.b16 %v1027
        %v1256 = vunpack.c.l.b16 %v1028
        %v1257 = vunpack.c.l.b16 %v1029
        %v1258 = vunpack.c.l.b16 %v1030
        %v1259 = vunpack.c.l.b16 %v1031
        %v1260 = vunpack.c.l.b16 %v1032
        %v1261 = vunpack.c.l.b16 %v1033
        %v1262 = vunpack.c.l.b16 %v1034
        %v1263 = vunpack.c.l.b16 %v1035
        %v1264 = vunpack.c.l.b16 %v1036
        %v1265 = vunpack.c.l.b16 %v1037
        %v1266 = vunpack.c.l.b16 %v1038
        %v1267 = vunpack.c.l.b16 %v1039
        %v1268 = vunpack.c.l.b16 %v1040
        %v1269 = vunpack.c.l.b16 %v1041
        %v1270 = vunpack.c.l.b16 %v1042
        %v1271 = vunpack.c.l.b16 %v1043
        %v1272 = vunpack.c.l.b16 %v1044
        %v1273 = vunpack.c.l.b16 %v1045
        %v1274 = vunpack.c.l.b16 %v1046
        %v1275 = vunpack.c.l.b16 %v1047
        %v1276 = vunpack.c.l.b16 %v1048
        %v1277 = vunpack.c.l.b16 %v1049
        %v1278 = vunpack.c.l.b16 %v1050
        %v1279 = vunpack.c.l.b16 %v1051
        %v1280 = vunpack.c.l.b16 %v1052
        %v1281 = vunpack.c.l.b16 %v1053
        %v1282 = vunpack.c.l.b16 %v1054
        %v1283 = vunpack.c.l.b16 %v1055
        %v1284 = vunpack.c.l.b16 %v1056
        %v1285 = vunpack.c.l.b16 %v1057
        %v1286 = vunpack.c.l.b16 %v1058
        %v1287 = vunpack.c.l.b16 %v1059
        %v1288 = vunpack.c.l.b16 %v1060
        %v1289 = vunpack.c.l.b16 %v1061
        %v1290 = vunpack.c.l.b16 %v1062
        %v1291 = vunpack.c.l.b16 %v1063
        %v1292 = vunpack.c.l.b16 %v1064
        %v1293 = vunpack.c.l.b16 %v1065
        %v1294 = vunpack.c.l.b16 %v1066
        %v1295 = vunpack.c.l.b16 %v1067
        %v1296 = vunpack.c.l.b16 %v1068
        %v1297 = vunpack.c.l.b16 %v1069
        %v1298 = vunpack.c.l.b16 %v1070
        %v1299 = vunpack.c.l.b16 %v1071
        %v1300 = vunpack.c.l.b16 %v1072
        %v1301 = vunpack.c.l.b16 %v1073
        %v1302 = vunpack.c.l.b16 %v1074
        %v1303 = vunpack.c.l.b16 %v1075
        %v1304 = vunpack.c.l.b16 %v1076
        %v1305 = vunpack.c.l.b16 %v1077
        %v1306 = vunpack.c.l.b16 %v1078
        %v1307 = vunpack.c.l.b16 %v1079
        %v1308 = vunpack.c.l.b16 %v1080
        %v1309 = vunpack.c.l.b16 %v1081
        %v1310 = vunpack.c.l.b16 %v1082
        %v1311 = vunpack.c.l.b16 %v1083
        %v1312 = vunpack.c.l.b16 %v1084
        %v1313 = vunpack.c.l.b16 %v1085
        %v1314 = vunpack.c.l.b16 %v1086
        %v1315 = vunpack.c.l.b16 %v1087
        %v1316 = vunpack.c.l.b16 %v1088
        %v1317 = vunpack.c.l.b16 %v1089
        %v1318 = vunpack.c.l.b16 %v1090
        %v1319 = vunpack.c.l.b16 %v1091
        %v1320 = vunpack.c.l.b16 %v1092
        %v1321 = vunpack.c.l.b16 %v1093
        %v1322 = vunpack.c.l.b16 %v1094
        %v1323 = vunpack.c.l.b16 %v1095
        %v1324 = vunpack.c.l.b16 %v1096
        %v1325 = vunpack.c.l.b16 %v1097
        %v1326 = vunpack.c.l.b16 %v1098
        %v1327 = vunpack.c.l.b16 %v1099
        %v1328 = vunpack.c.l.b16 %v1100
        %v1329 = vunpack.c.l.b16 %v1101
        %v1330 = vunpack.c.l.b16 %v1102
        %v1331 = vunpack.c.l.b16 %v1103
        %v1332 = vunpack.c.l.b16 %v1104
        %v1333 = vunpack.c.l.b16 %v1105
        %v1334 = vunpack.c.l.b16 %v1106
        %v1335 = vunpack.c.l.b16 %v1107
        %v1336 = vunpack.c.l.b16 %v1108
        %v1337 = vunpack.c.l.b16 %v1109
        %v1338 = vunpack.c.l.b16 %v1110
        %v1339 = vunpack.c.l.b16 %v1111
        %v1340 = vunpack.c.l.b16 %v1112
        %v1341 = vunpack.c.l.b16 %v1113
        %v1342 = vunpack.c.l.b16 %v1114
        %v1343 = vunpack.c.l.b16 %v1115
        %v1344 = vunpack.c.l.b16 %v1116
        %v1345 = vunpack.c.l.b16 %v1117
        %v1346 = vunpack.c.l.b16 %v1118
        %v1347 = vpack.c.b16 %v1236, %v1235
        %v1348 = vpack.c.b16 %v1238, %v1237
        %v1349 = vpack.c.b16 %v1240, %v1239
        %v1350 = vpack.c.b16 %v1242, %v1241
        %v1351 = vpack.c.b16 %v1244, %v1243
        %v1352 = vpack.c.b16 %v1246, %v1245
        %v1353 = vpack.c.b16 %v1248, %v1247
        %v1354 = vpack.c.b16 %v1250, %v1249
        %v1355 = vpack.c.b16 %v1252, %v1251
        %v1356 = vpack.c.b16 %v1254, %v1253
        %v1357 = vpack.c.b16 %v1256, %v1255
        %v1358 = vpack.c.b16 %v1258, %v1257
        %v1359 = vpack.c.b16 %v1260, %v1259
        %v1360 = vpack.c.b16 %v1262, %v1261
        %v1361 = vpack.c.b16 %v1264, %v1263
        %v1362 = vpack.c.b16 %v1266, %v1265
        %v1363 = vpack.c.b16 %v1268, %v1267
        %v1364 = vpack.c.b16 %v1270, %v1269
        %v1365 = vpack.c.b16 %v1272, %v1271
        %v1366 = vpack.c.b16 %v1274, %v1273
        %v1367 = vpack.c.b16 %v1276, %v1275
        %v1368 = vpack.c.b16 %v1278, %v1277
        %v1369 = vpack.c.b16 %v1280, %v1279
        %v1370 = vpack.c.b16 %v1282, %v1281
        %v1371 = vpack.c.b16 %v1284, %v1283
        %v1372 = vpack.c.b16 %v1286, %v1285
        %v1373 = vpack.c.b16 %v1288, %v1287
        %v1374 = vpack.c.b16 %v1290, %v1289
        %v1375 = vpack.c.b16 %v1292, %v1291
        %v1376 = vpack.c.b16 %v1294, %v1293
        %v1377 = vpack.c.b16 %v1296, %v1295
        %v1378 = vpack.c.b16 %v1298, %v1297
        %v1379 = vpack.c.b16 %v1300, %v1299
        %v1380 = vpack.c.b16 %v1302, %v1301
        %v1381 = vpack.c.b16 %v1304, %v1303
        %v1382 = vpack.c.b16 %v1306, %v1305
        %v1383 = vpack.c.b16 %v1308, %v1307
        %v1384 = vpack.c.b16 %v1310, %v1309
        %v1385 = vpack.c.b16 %v1312, %v1311
        %v1386 = vpack.c.b16 %v1314, %v1313
        %v1387 = vpack.c.b16 %v1316, %v1315
        %v1388 = vpack.c.b16 %v1318, %v1317
        %v1389 = vpack.c.b16 %v1320, %v1319
        %v1390 = vpack.c.b16 %v1322, %v1321
        %v1391 = vpack.c.b16 %v1324, %v1323
        %v1392 = vpack.c.b16 %v1326, %v1325
        %v1393 = vpack.c.b16 %v1328, %v1327
        %v1394 = vpack.c.b16 %v1330, %v1329
        %v1395 = vpack.c.b16 %v1332, %v1331
        %v1396 = vpack.c.b16 %v1334, %v1333
        %v1397 = vpack.c.b16 %v1336, %v1335
        %v1398 = vpack.c.b16 %v1338, %v1337
        %v1399 = vpack.c.b16 %v1340, %v1339
        %v1400 = vpack.c.b16 %v1342, %v1341
        %v1401 = vpack.c.b16 %v1344, %v1343
        %v1402 = vpack.c.b16 %v1346, %v1345
        %1459 = vmatprep.subr.bf16.mxu0 0
        %1460 = vmatpush1.bf16.msra.mxu0 %v1347
        %1461 = vmatprep.subr.bf16.mxu0 0
        %1462 = vmatpush1.bf16.msra.mxu0 %v1348
        %1463 = vmatprep.subr.bf16.mxu0 0
        %1464 = vmatpush1.bf16.msra.mxu0 %v1349
        %1465 = vmatprep.subr.bf16.mxu0 0
        %1466 = vmatpush1.bf16.msra.mxu0 %v1350
        %1467 = vmatprep.subr.bf16.mxu0 0
        %1468 = vmatpush1.bf16.msra.mxu0 %v1351
        %1469 = vmatprep.subr.bf16.mxu0 0
        %1470 = vmatpush1.bf16.msra.mxu0 %v1352
        %1471 = vmatprep.subr.bf16.mxu0 0
        %1472 = vmatpush1.bf16.msra.mxu0 %v1353
        %1473 = vmatprep.subr.bf16.mxu0 0
        %1474 = vmatpush1.bf16.msra.mxu0 %v1354
        %1475 = vmatprep.subr.bf16.mxu0 0
        %1476 = vmatpush1.bf16.msra.mxu0 %v1355
        %1477 = vmatprep.subr.bf16.mxu0 0
        %1478 = vmatpush1.bf16.msra.mxu0 %v1356
        %1479 = vmatprep.subr.bf16.mxu0 0
        %1480 = vmatpush1.bf16.msra.mxu0 %v1357
        %1481 = vmatprep.subr.bf16.mxu0 0
        %1482 = vmatpush1.bf16.msra.mxu0 %v1358
        %1483 = vmatprep.subr.bf16.mxu0 0
        %1484 = vmatpush1.bf16.msra.mxu0 %v1359
        %1485 = vmatprep.subr.bf16.mxu0 0
        %1486 = vmatpush1.bf16.msra.mxu0 %v1360
        %1487 = vmatprep.subr.bf16.mxu0 0
        %1488 = vmatpush1.bf16.msra.mxu0 %v1361
        %1489 = vmatprep.subr.bf16.mxu0 0
        %1490 = vmatpush1.bf16.msra.mxu0 %v1362
        %1491 = vmatprep.mubr.bf16.mxu0 %v994
        %1492 = vmatmul.mubr.bf16.gmra.mrb[0].mxu0 %v993
        %v1493 = vpop.f32.mrb[0].mxu0
        %v1494 = vadd.f32 %v1122, %v1493
        %v1495 = vpop.f32.mrb[0].mxu0
        %v1496 = vpop.f32.mrb[0].mxu0
        %v1497 = vadd.f32 %v1122, %v1496
        %v1498 = vpop.f32.mrb[0].mxu0
        %1499 = vmatprep.mubr.bf16.mxu0 %v1001
        %1500 = vmatmul.mubr.bf16.gmra.mrb[0].mxu0 %v1000
        %v1501 = vpop.f32.mrb[0].mxu0
        %v1502 = vadd.f32 %v1122, %v1501
        %v1503 = vpop.f32.mrb[0].mxu0
        %v1504 = vpop.f32.mrb[0].mxu0
        %v1505 = vadd.f32 %v1122, %v1504
        %v1506 = vpop.f32.mrb[0].mxu0
        %1507 = vdwg.mxu0
        %1508 = vmatprep.subr.bf16.mxu0 0
        %1509 = vmatpush1.bf16.msra.mxu0 %v1363
        %1510 = vmatprep.subr.bf16.mxu0 0
        %1511 = vmatpush1.bf16.msra.mxu0 %v1364
        %1512 = vmatprep.subr.bf16.mxu0 0
        %1513 = vmatpush1.bf16.msra.mxu0 %v1365
        %1514 = vmatprep.subr.bf16.mxu0 0
        %1515 = vmatpush1.bf16.msra.mxu0 %v1366
        %1516 = vmatprep.subr.bf16.mxu0 0
        %1517 = vmatpush1.bf16.msra.mxu0 %v1367
        %1518 = vmatprep.subr.bf16.mxu0 0
        %1519 = vmatpush1.bf16.msra.mxu0 %v1368
        %1520 = vmatprep.subr.bf16.mxu0 0
        %1521 = vmatpush1.bf16.msra.mxu0 %v1369
        %1522 = vmatprep.subr.bf16.mxu0 0
        %1523 = vmatpush1.bf16.msra.mxu0 %v1370
        %1524 = vmatprep.subr.bf16.mxu0 0
        %1525 = vmatpush1.bf16.msra.mxu0 %v1371
        %1526 = vmatprep.subr.bf16.mxu0 0
        %1527 = vmatpush1.bf16.msra.mxu0 %v1372
        %1528 = vmatprep.subr.bf16.mxu0 0
        %1529 = vmatpush1.bf16.msra.mxu0 %v1373
        %1530 = vmatprep.subr.bf16.mxu0 0
        %1531 = vmatpush1.bf16.msra.mxu0 %v1374
        %1532 = vmatprep.subr.bf16.mxu0 0
        %1533 = vmatpush1.bf16.msra.mxu0 %v1375
        %1534 = vmatprep.subr.bf16.mxu0 0
        %1535 = vmatpush1.bf16.msra.mxu0 %v1376
        %1536 = vmatprep.subr.bf16.mxu0 0
        %1537 = vmatpush1.bf16.msra.mxu0 %v1377
        %1538 = vmatprep.subr.bf16.mxu0 0
        %1539 = vmatpush1.bf16.msra.mxu0 %v1378
        %1540 = vmatprep.mubr.bf16.mxu0 %v996
        %1541 = vmatmul.mubr.bf16.gmra.mrb[0].mxu0 %v995
        %v1542 = vpop.f32.mrb[0].mxu0
        %v1543 = vadd.f32 %v1494, %v1542
        %v1544 = vpop.f32.mrb[0].mxu0
        %v1545 = vpop.f32.mrb[0].mxu0
        %v1546 = vadd.f32 %v1497, %v1545
        %v1547 = vpop.f32.mrb[0].mxu0
        %1548 = vmatprep.mubr.bf16.mxu0 %v1003
        %1549 = vmatmul.mubr.bf16.gmra.mrb[0].mxu0 %v1002
        %v1550 = vpop.f32.mrb[0].mxu0
        %v1551 = vadd.f32 %v1502, %v1550
        %v1552 = vpop.f32.mrb[0].mxu0
        %v1553 = vpop.f32.mrb[0].mxu0
        %v1554 = vadd.f32 %v1505, %v1553
        %v1555 = vpop.f32.mrb[0].mxu0
        %1556 = vdwg.mxu0
        %1557 = vmatprep.subr.bf16.mxu0 0
        %1558 = vmatpush1.bf16.msra.mxu0 %v1379
        %1559 = vmatprep.subr.bf16.mxu0 0
        %1560 = vmatpush1.bf16.msra.mxu0 %v1380
        %1561 = vmatprep.subr.bf16.mxu0 0
        %1562 = vmatpush1.bf16.msra.mxu0 %v1381
        %1563 = vmatprep.subr.bf16.mxu0 0
        %1564 = vmatpush1.bf16.msra.mxu0 %v1382
        %1565 = vmatprep.subr.bf16.mxu0 0
        %1566 = vmatpush1.bf16.msra.mxu0 %v1383
        %1567 = vmatprep.subr.bf16.mxu0 0
        %1568 = vmatpush1.bf16.msra.mxu0 %v1384
        %1569 = vmatprep.subr.bf16.mxu0 0
        %1570 = vmatpush1.bf16.msra.mxu0 %v1385
        %1571 = vmatprep.subr.bf16.mxu0 0
        %1572 = vmatpush1.bf16.msra.mxu0 %v1386
        %1573 = vmatprep.subr.bf16.mxu0 0
        %1574 = vmatpush1.bf16.msra.mxu0 %v1387
        %1575 = vmatprep.subr.bf16.mxu0 0
        %1576 = vmatpush1.bf16.msra.mxu0 %v1388
        %1577 = vmatprep.subr.bf16.mxu0 0
        %1578 = vmatpush1.bf16.msra.mxu0 %v1389
        %1579 = vmatprep.subr.bf16.mxu0 0
        %1580 = vmatpush1.bf16.msra.mxu0 %v1390
        %1581 = vmatprep.subr.bf16.mxu0 0
        %1582 = vmatpush1.bf16.msra.mxu0 %v1391
        %1583 = vmatprep.subr.bf16.mxu0 0
        %1584 = vmatpush1.bf16.msra.mxu0 %v1392
        %1585 = vmatprep.subr.bf16.mxu0 0
        %1586 = vmatpush1.bf16.msra.mxu0 %v1393
        %1587 = vmatprep.subr.bf16.mxu0 0
        %1588 = vmatpush1.bf16.msra.mxu0 %v1394
        %1589 = vmatprep.mubr.bf16.mxu0 %v998
        %1590 = vmatmul.mubr.bf16.gmra.mrb[0].mxu0 %v997
        %v1591 = vpop.f32.mrb[0].mxu0
        %v1592 = vadd.f32 %v1543, %v1591
        %v1593 = vpop.f32.mrb[0].mxu0
        %v1594 = vpop.f32.mrb[0].mxu0
        %v1595 = vadd.f32 %v1546, %v1594
        %v1596 = vpop.f32.mrb[0].mxu0
        %1597 = vmatprep.mubr.bf16.mxu0 %v1005
        %1598 = vmatmul.mubr.bf16.gmra.mrb[0].mxu0 %v1004
        %v1599 = vpop.f32.mrb[0].mxu0
        %v1600 = vadd.f32 %v1551, %v1599
        %v1601 = vpop.f32.mrb[0].mxu0
        %v1602 = vpop.f32.mrb[0].mxu0
        %v1603 = vadd.f32 %v1554, %v1602
        %v1604 = vpop.f32.mrb[0].mxu0
        %1605 = vdwg.mxu0
        %1606 = vmatprep.subr.bf16.mxu0 0
        %1607 = vmatpush1.bf16.msra.mxu0 %v1395
        %1608 = vmatprep.subr.bf16.mxu0 0
        %1609 = vmatpush1.bf16.msra.mxu0 %v1396
        %1610 = vmatprep.subr.bf16.mxu0 0
        %1611 = vmatpush1.bf16.msra.mxu0 %v1397
        %1612 = vmatprep.subr.bf16.mxu0 0
        %1613 = vmatpush1.bf16.msra.mxu0 %v1398
        %1614 = vmatprep.subr.bf16.mxu0 0
        %1615 = vmatpush1.bf16.msra.mxu0 %v1399
        %1616 = vmatprep.subr.bf16.mxu0 0
        %1617 = vmatpush1.bf16.msra.mxu0 %v1400
        %1618 = vmatprep.subr.bf16.mxu0 0
        %1619 = vmatpush1.bf16.msra.mxu0 %v1401
        %1620 = vmatprep.subr.bf16.mxu0 0
        %1621 = vmatpush1.bf16.msra.mxu0 %v1402
        %1622 = vmatprep.subr.bf16.mxu0 0
        %1623 = vmatpush1.bf16.msra.mxu0 0
        %1624 = vmatprep.subr.bf16.mxu0 0
        %1625 = vmatpush1.bf16.msra.mxu0 0
        %1626 = vmatprep.subr.bf16.mxu0 0
        %1627 = vmatpush1.bf16.msra.mxu0 0
        %1628 = vmatprep.subr.bf16.mxu0 0
        %1629 = vmatpush1.bf16.msra.mxu0 0
        %1630 = vmatprep.subr.bf16.mxu0 0
        %1631 = vmatpush1.bf16.msra.mxu0 0
        %1632 = vmatprep.subr.bf16.mxu0 0
        %1633 = vmatpush1.bf16.msra.mxu0 0
        %1634 = vmatprep.subr.bf16.mxu0 0
        %1635 = vmatpush1.bf16.msra.mxu0 0
        %1636 = vmatprep.subr.bf16.mxu0 0
        %1637 = vmatpush1.bf16.msra.mxu0 0
        %1638 = vmatprep.mubr.bf16.mxu0 0
        %1639 = vmatmul.mubr.bf16.gmra.mrb[0].mxu0 %v999
        %v1640 = vpop.f32.mrb[0].mxu0
        %v1641 = vadd.f32 %v1592, %v1640
        %v1642 = vpop.f32.mrb[0].mxu0
        %v1643 = vpop.f32.mrb[0].mxu0
        %v1644 = vadd.f32 %v1595, %v1643
        %v1645 = vpop.f32.mrb[0].mxu0
        %1646 = vmatprep.mubr.bf16.mxu0 0
        %1647 = vmatmul.mubr.bf16.gmra.mrb[0].mxu0 %v1006
        %v1648 = vpop.f32.mrb[0].mxu0
        %v1649 = vadd.f32 %v1600, %v1648
        %v1650 = vpop.f32.mrb[0].mxu0
        %v1651 = vpop.f32.mrb[0].mxu0
        %v1652 = vadd.f32 %v1603, %v1651
        %v1653 = vpop.f32.mrb[0].mxu0
        %1654 = vdwg.mxu0
        %v1655 = vadd.f32 %v1641, %v953
        %v1656 = vadd.f32 %v1644, %v954
        %v1657 = vadd.f32 %v1649, %v955
        %v1658 = vadd.f32 %v1652, %v956
        %v1659 = vmul.f32 %v1655, 0.5
        %v1660 = vmul.f32 %v1656, 0.5
        %v1661 = vmul.f32 %v1657, 0.5
        %v1662 = vmul.f32 %v1658, 0.5
        %v1663 = vmul.f32 %v1655, 0.044715
        %v1664 = vmul.f32 %v1656, 0.044715
        %v1665 = vmul.f32 %v1657, 0.044715
        %v1666 = vmul.f32 %v1658, 0.044715
        %v1667 = vmul.f32 %v1663, %v1655
        %v1668 = vmul.f32 %v1664, %v1656
        %v1669 = vmul.f32 %v1665, %v1657
        %v1670 = vmul.f32 %v1666, %v1658
        %v1671 = vmul.f32 %v1667, %v1655
        %v1672 = vmul.f32 %v1668, %v1656
        %v1673 = vmul.f32 %v1669, %v1657
        %v1674 = vmul.f32 %v1670, %v1658
        %v1675 = vadd.f32 %v1655, %v1671
        %v1676 = vadd.f32 %v1656, %v1672
        %v1677 = vadd.f32 %v1657, %v1673
        %v1678 = vadd.f32 %v1658, %v1674
        %v1679 = vmul.f32 %v1675, 0.7978846
        %v1680 = vmul.f32 %v1676, 0.7978846
        %v1681 = vmul.f32 %v1677, 0.7978846
        %v1682 = vmul.f32 %v1678, 0.7978846
        %v1683 = vtanh.pop %v1679
        %v1684 = vtanh.pop %v1680
        %v1685 = vtanh.pop %v1681
        %v1686 = vtanh.pop %v1682
        %v1687 = vadd.f32 %v1683, 1.0
        %v1688 = vadd.f32 %v1684, 1.0
        %v1689 = vadd.f32 %v1685, 1.0
        %v1690 = vadd.f32 %v1686, 1.0
        %v1691 = vmul.f32 %v1659, %v1687
        %v1692 = vmul.f32 %v1660, %v1688
        %v1693 = vmul.f32 %v1661, %v1689
        %v1694 = vmul.f32 %v1662, %v1690
        %v1695 = vlaneseq
        %v1696 = vshrl.u32 %v1695, 7
        %v1697 = vsub.s32 0, %v1696
        %v1698 = vrot.slane %v333, %v1697
        %v1699 = vmul.f32 %v1691, %v1698
        %v1700 = vmul.f32 %v1692, %v1698
        %v1701 = vmul.f32 %v1693, %v1698
        %v1702 = vmul.f32 %v1694, %v1698
        %v1703 = vlaneseq
        %v1704 = vshrl.u32 %v1703, 7
        %v1705 = vsub.s32 0, %v1704
        %v1706 = vrot.slane %v334, %v1705
        %v1707 = vadd.f32 %v1699, %v1706
        %v1708 = vadd.f32 %v1700, %v1706
        %v1709 = vadd.f32 %v1701, %v1706
        %v1710 = vadd.f32 %v1702, %v1706
        %v1711 = vpack.c.bf16 %v1708, %v1707
        %v1712 = vpack.c.bf16 %v1710, %v1709
        %v1713 = vld [vmem:[#allocation9] sm:$0xff]
        %v1714 = vld [vmem:[#allocation9 + $0x8] sm:$0xff]
        %v1715 = vld [vmem:[#allocation9 + $0x10] sm:$0xff]
        %v1716 = vld [vmem:[#allocation9 + $0x18] sm:$0xff]
        %v1717 = vld [vmem:[#allocation9 + $0x20] sm:$0xff]
        %v1718 = vld [vmem:[#allocation9 + $0x28] sm:$0xff]
        %v1719 = vld [vmem:[#allocation9 + $0x30] sm:$0xff]
        %v1720 = vld [vmem:[#allocation9 + $0x38] sm:$0xff]
        %v1721 = vld [vmem:[#allocation9 + $0x40] sm:$0xff]
        %v1722 = vld [vmem:[#allocation9 + $0x48] sm:$0xff]
        %v1723 = vld [vmem:[#allocation9 + $0x50] sm:$0xff]
        %v1724 = vld [vmem:[#allocation9 + $0x58] sm:$0xff]
        %v1725 = vld [vmem:[#allocation9 + $0x60] sm:$0xff]
        %v1726 = vld [vmem:[#allocation9 + $0x68] sm:$0xff]
        %v1727 = vld [vmem:[#allocation9 + $0x70] sm:$0xff]
        %v1728 = vld [vmem:[#allocation9 + $0x78] sm:$0xff]
        %v1729 = vld [vmem:[#allocation9 + $0x80] sm:$0xff]
        %v1730 = vld [vmem:[#allocation9 + $0x88] sm:$0xff]
        %v1731 = vld [vmem:[#allocation9 + $0x90] sm:$0xff]
        %v1732 = vld [vmem:[#allocation9 + $0x98] sm:$0xff]
        %v1733 = vld [vmem:[#allocation9 + $0xa0] sm:$0xff]
        %v1734 = vld [vmem:[#allocation9 + $0xa8] sm:$0xff]
        %v1735 = vld [vmem:[#allocation9 + $0xb0] sm:$0xff]
        %v1736 = vld [vmem:[#allocation9 + $0xb8] sm:$0xff]
        %v1737 = vld [vmem:[#allocation9 + $0xc0] sm:$0xff]
        %v1738 = vld [vmem:[#allocation9 + $0xc8] sm:$0xff]
        %v1739 = vld [vmem:[#allocation9 + $0xd0] sm:$0xff]
        %v1740 = vld [vmem:[#allocation9 + $0xd8] sm:$0xff]
        %v1741 = vld [vmem:[#allocation9 + $0xe0] sm:$0xff]
        %v1742 = vld [vmem:[#allocation9 + $0xe8] sm:$0xff]
        %v1743 = vld [vmem:[#allocation9 + $0xf0] sm:$0xff]
        %v1744 = vld [vmem:[#allocation9 + $0xf8] sm:$0xff]
        %v1745 = vld [vmem:[#allocation9 + $0x100] sm:$0xff]
        %v1746 = vld [vmem:[#allocation9 + $0x108] sm:$0xff]
        %v1747 = vld [vmem:[#allocation9 + $0x110] sm:$0xff]
        %v1748 = vld [vmem:[#allocation9 + $0x118] sm:$0xff]
        %v1749 = vld [vmem:[#allocation9 + $0x120] sm:$0xff]
        %v1750 = vld [vmem:[#allocation9 + $0x128] sm:$0xff]
        %v1751 = vld [vmem:[#allocation9 + $0x130] sm:$0xff]
        %v1752 = vld [vmem:[#allocation9 + $0x138] sm:$0xff]
        %v1753 = vld [vmem:[#allocation9 + $0x140] sm:$0xff]
        %v1754 = vld [vmem:[#allocation9 + $0x148] sm:$0xff]
        %v1755 = vld [vmem:[#allocation9 + $0x150] sm:$0xff]
        %v1756 = vld [vmem:[#allocation9 + $0x158] sm:$0xff]
        %v1757 = vld [vmem:[#allocation9 + $0x160] sm:$0xff]
        %v1758 = vld [vmem:[#allocation9 + $0x168] sm:$0xff]
        %v1759 = vld [vmem:[#allocation9 + $0x170] sm:$0xff]
        %v1760 = vld [vmem:[#allocation9 + $0x178] sm:$0xff]
        %v1809 = vunpack.c.l.b16 %v1713
        %v1810 = vunpack.c.h.b16 %v1713
        %v1811 = vunpack.c.l.b16 %v1714
        %v1812 = vunpack.c.h.b16 %v1714
        %v1813 = vunpack.c.l.b16 %v1715
        %v1814 = vunpack.c.h.b16 %v1715
        %v1815 = vunpack.c.l.b16 %v1716
        %v1816 = vunpack.c.h.b16 %v1716
        %v1817 = vunpack.c.l.b16 %v1717
        %v1818 = vunpack.c.h.b16 %v1717
        %v1819 = vunpack.c.l.b16 %v1718
        %v1820 = vunpack.c.h.b16 %v1718
        %v1821 = vunpack.c.l.b16 %v1719
        %v1822 = vunpack.c.h.b16 %v1719
        %v1823 = vunpack.c.l.b16 %v1720
        %v1824 = vunpack.c.h.b16 %v1720
        %v1825 = vunpack.c.l.b16 %v1721
        %v1826 = vunpack.c.h.b16 %v1721
        %v1827 = vunpack.c.l.b16 %v1722
        %v1828 = vunpack.c.h.b16 %v1722
        %v1829 = vunpack.c.l.b16 %v1723
        %v1830 = vunpack.c.h.b16 %v1723
        %v1831 = vunpack.c.l.b16 %v1724
        %v1832 = vunpack.c.h.b16 %v1724
        %v1833 = vunpack.c.l.b16 %v1725
        %v1834 = vunpack.c.h.b16 %v1725
        %v1835 = vunpack.c.l.b16 %v1726
        %v1836 = vunpack.c.h.b16 %v1726
        %v1837 = vunpack.c.l.b16 %v1727
        %v1838 = vunpack.c.h.b16 %v1727
        %v1839 = vunpack.c.l.b16 %v1728
        %v1840 = vunpack.c.h.b16 %v1728
        %v1841 = vunpack.c.l.b16 %v1729
        %v1842 = vunpack.c.h.b16 %v1729
        %v1843 = vunpack.c.l.b16 %v1730
        %v1844 = vunpack.c.h.b16 %v1730
        %v1845 = vunpack.c.l.b16 %v1731
        %v1846 = vunpack.c.h.b16 %v1731
        %v1847 = vunpack.c.l.b16 %v1732
        %v1848 = vunpack.c.h.b16 %v1732
        %v1849 = vunpack.c.l.b16 %v1733
        %v1850 = vunpack.c.h.b16 %v1733
        %v1851 = vunpack.c.l.b16 %v1734
        %v1852 = vunpack.c.h.b16 %v1734
        %v1853 = vunpack.c.l.b16 %v1735
        %v1854 = vunpack.c.h.b16 %v1735
        %v1855 = vunpack.c.l.b16 %v1736
        %v1856 = vunpack.c.h.b16 %v1736
        %v1857 = vunpack.c.l.b16 %v1737
        %v1858 = vunpack.c.h.b16 %v1737
        %v1859 = vunpack.c.l.b16 %v1738
        %v1860 = vunpack.c.h.b16 %v1738
        %v1861 = vunpack.c.l.b16 %v1739
        %v1862 = vunpack.c.h.b16 %v1739
        %v1863 = vunpack.c.l.b16 %v1740
        %v1864 = vunpack.c.h.b16 %v1740
        %v1865 = vunpack.c.l.b16 %v1741
        %v1866 = vunpack.c.h.b16 %v1741
        %v1867 = vunpack.c.l.b16 %v1742
        %v1868 = vunpack.c.h.b16 %v1742
        %v1869 = vunpack.c.l.b16 %v1743
        %v1870 = vunpack.c.h.b16 %v1743
        %v1871 = vunpack.c.l.b16 %v1744
        %v1872 = vunpack.c.h.b16 %v1744
        %v1873 = vunpack.c.l.b16 %v1745
        %v1874 = vunpack.c.h.b16 %v1745
        %v1875 = vunpack.c.l.b16 %v1746
        %v1876 = vunpack.c.h.b16 %v1746
        %v1877 = vunpack.c.l.b16 %v1747
        %v1878 = vunpack.c.h.b16 %v1747
        %v1879 = vunpack.c.l.b16 %v1748
        %v1880 = vunpack.c.h.b16 %v1748
        %v1881 = vunpack.c.l.b16 %v1749
        %v1882 = vunpack.c.h.b16 %v1749
        %v1883 = vunpack.c.l.b16 %v1750
        %v1884 = vunpack.c.h.b16 %v1750
        %v1885 = vunpack.c.l.b16 %v1751
        %v1886 = vunpack.c.h.b16 %v1751
        %v1887 = vunpack.c.l.b16 %v1752
        %v1888 = vunpack.c.h.b16 %v1752
        %v1889 = vunpack.c.l.b16 %v1753
        %v1890 = vunpack.c.h.b16 %v1753
        %v1891 = vunpack.c.l.b16 %v1754
        %v1892 = vunpack.c.h.b16 %v1754
        %v1893 = vunpack.c.l.b16 %v1755
        %v1894 = vunpack.c.h.b16 %v1755
        %v1895 = vunpack.c.l.b16 %v1756
        %v1896 = vunpack.c.h.b16 %v1756
        %v1897 = vunpack.c.l.b16 %v1757
        %v1898 = vunpack.c.h.b16 %v1757
        %v1899 = vunpack.c.l.b16 %v1758
        %v1900 = vunpack.c.h.b16 %v1758
        %v1901 = vunpack.c.l.b16 %v1759
        %v1902 = vunpack.c.h.b16 %v1759
        %v1903 = vunpack.c.l.b16 %v1760
        %v1904 = vunpack.c.h.b16 %v1760
        %v1905 = vpack.c.b16 %v1815, %v1809
        %v1906 = vpack.c.b16 %v1816, %v1810
        %v1907 = vpack.c.b16 %v1817, %v1811
        %v1908 = vpack.c.b16 %v1818, %v1812
        %v1909 = vpack.c.b16 %v1819, %v1813
        %v1910 = vpack.c.b16 %v1820, %v1814
        %v1911 = vpack.c.b16 %v1827, %v1821
        %v1912 = vpack.c.b16 %v1828, %v1822
        %v1913 = vpack.c.b16 %v1829, %v1823
        %v1914 = vpack.c.b16 %v1830, %v1824
        %v1915 = vpack.c.b16 %v1831, %v1825
        %v1916 = vpack.c.b16 %v1832, %v1826
        %v1917 = vpack.c.b16 %v1839, %v1833
        %v1918 = vpack.c.b16 %v1840, %v1834
        %v1919 = vpack.c.b16 %v1841, %v1835
        %v1920 = vpack.c.b16 %v1842, %v1836
        %v1921 = vpack.c.b16 %v1843, %v1837
        %v1922 = vpack.c.b16 %v1844, %v1838
        %v1923 = vpack.c.b16 %v1851, %v1845
        %v1924 = vpack.c.b16 %v1852, %v1846
        %v1925 = vpack.c.b16 %v1853, %v1847
        %v1926 = vpack.c.b16 %v1854, %v1848
        %v1927 = vpack.c.b16 %v1855, %v1849
        %v1928 = vpack.c.b16 %v1856, %v1850
        %v1929 = vpack.c.b16 %v1863, %v1857
        %v1930 = vpack.c.b16 %v1864, %v1858
        %v1931 = vpack.c.b16 %v1865, %v1859
        %v1932 = vpack.c.b16 %v1866, %v1860
        %v1933 = vpack.c.b16 %v1867, %v1861
        %v1934 = vpack.c.b16 %v1868, %v1862
        %v1935 = vpack.c.b16 %v1875, %v1869
        %v1936 = vpack.c.b16 %v1876, %v1870
        %v1937 = vpack.c.b16 %v1877, %v1871
        %v1938 = vpack.c.b16 %v1878, %v1872
        %v1939 = vpack.c.b16 %v1879, %v1873
        %v1940 = vpack.c.b16 %v1880, %v1874
        %v1941 = vpack.c.b16 %v1887, %v1881
        %v1942 = vpack.c.b16 %v1888, %v1882
        %v1943 = vpack.c.b16 %v1889, %v1883
        %v1944 = vpack.c.b16 %v1890, %v1884
        %v1945 = vpack.c.b16 %v1891, %v1885
        %v1946 = vpack.c.b16 %v1892, %v1886
        %v1947 = vpack.c.b16 %v1899, %v1893
        %v1948 = vpack.c.b16 %v1900, %v1894
        %v1949 = vpack.c.b16 %v1901, %v1895
        %v1950 = vpack.c.b16 %v1902, %v1896
        %v1951 = vpack.c.b16 %v1903, %v1897
        %v1952 = vpack.c.b16 %v1904, %v1898
        %2001 = vmatprep.subr.bf16.mxu0 %v1906
        %2002 = vmatpush1.bf16.msra.mxu0 %v1905
        %2003 = vmatprep.subr.bf16.mxu0 %v1912
        %2004 = vmatpush1.bf16.msra.mxu0 %v1911
        %2005 = vmatprep.subr.bf16.mxu0 %v1918
        %2006 = vmatpush1.bf16.msra.mxu0 %v1917
        %2007 = vmatprep.subr.bf16.mxu0 %v1924
        %2008 = vmatpush1.bf16.msra.mxu0 %v1923
        %2009 = vmatprep.subr.bf16.mxu0 %v1930
        %2010 = vmatpush1.bf16.msra.mxu0 %v1929
        %2011 = vmatprep.subr.bf16.mxu0 %v1936
        %2012 = vmatpush1.bf16.msra.mxu0 %v1935
        %2013 = vmatprep.subr.bf16.mxu0 %v1942
        %2014 = vmatpush1.bf16.msra.mxu0 %v1941
        %2015 = vmatprep.subr.bf16.mxu0 %v1948
        %2016 = vmatpush1.bf16.msra.mxu0 %v1947
        %2017 = vmatprep.subr.bf16.mxu0 0
        %2018 = vmatpush1.bf16.msra.mxu0 0
        %2019 = vmatprep.subr.bf16.mxu0 0
        %2020 = vmatpush1.bf16.msra.mxu0 0
        %2021 = vmatprep.subr.bf16.mxu0 0
        %2022 = vmatpush1.bf16.msra.mxu0 0
        %2023 = vmatprep.subr.bf16.mxu0 0
        %2024 = vmatpush1.bf16.msra.mxu0 0
        %2025 = vmatprep.subr.bf16.mxu0 0
        %2026 = vmatpush1.bf16.msra.mxu0 0
        %2027 = vmatprep.subr.bf16.mxu0 0
        %2028 = vmatpush1.bf16.msra.mxu0 0
        %2029 = vmatprep.subr.bf16.mxu0 0
        %2030 = vmatpush1.bf16.msra.mxu0 0
        %2031 = vmatprep.subr.bf16.mxu0 0
        %2032 = vmatpush1.bf16.msra.mxu0 0
        %2033 = vmatprep.mubr.bf16.mxu0 0
        %2034 = vmatmul.mubr.bf16.gmra.mrb[0].mxu0 %v1711
        %v2035 = vpop.f32.mrb[0].mxu0
        %v2036 = vadd.f32 0.0, %v2035
        %v2037 = vpop.f32.mrb[0].mxu0
        %v2038 = vadd.f32 0.0, %v2037
        %v2039 = vpop.f32.mrb[0].mxu0
        %v2040 = vadd.f32 0.0, %v2039
        %v2041 = vpop.f32.mrb[0].mxu0
        %v2042 = vadd.f32 0.0, %v2041
        %2043 = vmatprep.mubr.bf16.mxu0 0
        %2044 = vmatmul.mubr.bf16.gmra.mrb[0].mxu0 %v1712
        %v2045 = vpop.f32.mrb[0].mxu0
        %v2046 = vadd.f32 0.0, %v2045
        %v2047 = vpop.f32.mrb[0].mxu0
        %v2048 = vadd.f32 0.0, %v2047
        %v2049 = vpop.f32.mrb[0].mxu0
        %v2050 = vadd.f32 0.0, %v2049
        %v2051 = vpop.f32.mrb[0].mxu0
        %v2052 = vadd.f32 0.0, %v2051
        %2053 = vdwg.mxu0
        %2054 = vmatprep.subr.bf16.mxu0 %v1908
        %2055 = vmatpush1.bf16.msra.mxu0 %v1907
        %2056 = vmatprep.subr.bf16.mxu0 %v1914
        %2057 = vmatpush1.bf16.msra.mxu0 %v1913
        %2058 = vmatprep.subr.bf16.mxu0 %v1920
        %2059 = vmatpush1.bf16.msra.mxu0 %v1919
        %2060 = vmatprep.subr.bf16.mxu0 %v1926
        %2061 = vmatpush1.bf16.msra.mxu0 %v1925
        %2062 = vmatprep.subr.bf16.mxu0 %v1932
        %2063 = vmatpush1.bf16.msra.mxu0 %v1931
        %2064 = vmatprep.subr.bf16.mxu0 %v1938
        %2065 = vmatpush1.bf16.msra.mxu0 %v1937
        %2066 = vmatprep.subr.bf16.mxu0 %v1944
        %2067 = vmatpush1.bf16.msra.mxu0 %v1943
        %2068 = vmatprep.subr.bf16.mxu0 %v1950
        %2069 = vmatpush1.bf16.msra.mxu0 %v1949
        %2070 = vmatprep.subr.bf16.mxu0 0
        %2071 = vmatpush1.bf16.msra.mxu0 0
        %2072 = vmatprep.subr.bf16.mxu0 0
        %2073 = vmatpush1.bf16.msra.mxu0 0
        %2074 = vmatprep.subr.bf16.mxu0 0
        %2075 = vmatpush1.bf16.msra.mxu0 0
        %2076 = vmatprep.subr.bf16.mxu0 0
        %2077 = vmatpush1.bf16.msra.mxu0 0
        %2078 = vmatprep.subr.bf16.mxu0 0
        %2079 = vmatpush1.bf16.msra.mxu0 0
        %2080 = vmatprep.subr.bf16.mxu0 0
        %2081 = vmatpush1.bf16.msra.mxu0 0
        %2082 = vmatprep.subr.bf16.mxu0 0
        %2083 = vmatpush1.bf16.msra.mxu0 0
        %2084 = vmatprep.subr.bf16.mxu0 0
        %2085 = vmatpush1.bf16.msra.mxu0 0
        %2086 = vmatprep.mubr.bf16.mxu0 0
        %2087 = vmatmul.mubr.bf16.gmra.mrb[0].mxu0 %v1711
        %v2088 = vpop.f32.mrb[0].mxu0
        %v2089 = vadd.f32 0.0, %v2088
        %v2090 = vpop.f32.mrb[0].mxu0
        %v2091 = vadd.f32 0.0, %v2090
        %v2092 = vpop.f32.mrb[0].mxu0
        %v2093 = vadd.f32 0.0, %v2092
        %v2094 = vpop.f32.mrb[0].mxu0
        %v2095 = vadd.f32 0.0, %v2094
        %2096 = vmatprep.mubr.bf16.mxu0 0
        %2097 = vmatmul.mubr.bf16.gmra.mrb[0].mxu0 %v1712
        %v2098 = vpop.f32.mrb[0].mxu0
        %v2099 = vadd.f32 0.0, %v2098
        %v2100 = vpop.f32.mrb[0].mxu0
        %v2101 = vadd.f32 0.0, %v2100
        %v2102 = vpop.f32.mrb[0].mxu0
        %v2103 = vadd.f32 0.0, %v2102
        %v2104 = vpop.f32.mrb[0].mxu0
        %v2105 = vadd.f32 0.0, %v2104
        %2106 = vdwg.mxu0
        %2107 = vmatprep.subr.bf16.mxu0 %v1910
        %2108 = vmatpush1.bf16.msra.mxu0 %v1909
        %2109 = vmatprep.subr.bf16.mxu0 %v1916
        %2110 = vmatpush1.bf16.msra.mxu0 %v1915
        %2111 = vmatprep.subr.bf16.mxu0 %v1922
        %2112 = vmatpush1.bf16.msra.mxu0 %v1921
        %2113 = vmatprep.subr.bf16.mxu0 %v1928
        %2114 = vmatpush1.bf16.msra.mxu0 %v1927
        %2115 = vmatprep.subr.bf16.mxu0 %v1934
        %2116 = vmatpush1.bf16.msra.mxu0 %v1933
        %2117 = vmatprep.subr.bf16.mxu0 %v1940
        %2118 = vmatpush1.bf16.msra.mxu0 %v1939
        %2119 = vmatprep.subr.bf16.mxu0 %v1946
        %2120 = vmatpush1.bf16.msra.mxu0 %v1945
        %2121 = vmatprep.subr.bf16.mxu0 %v1952
        %2122 = vmatpush1.bf16.msra.mxu0 %v1951
        %2123 = vmatprep.subr.bf16.mxu0 0
        %2124 = vmatpush1.bf16.msra.mxu0 0
        %2125 = vmatprep.subr.bf16.mxu0 0
        %2126 = vmatpush1.bf16.msra.mxu0 0
        %2127 = vmatprep.subr.bf16.mxu0 0
        %2128 = vmatpush1.bf16.msra.mxu0 0
        %2129 = vmatprep.subr.bf16.mxu0 0
        %2130 = vmatpush1.bf16.msra.mxu0 0
        %2131 = vmatprep.subr.bf16.mxu0 0
        %2132 = vmatpush1.bf16.msra.mxu0 0
        %2133 = vmatprep.subr.bf16.mxu0 0
        %2134 = vmatpush1.bf16.msra.mxu0 0
        %2135 = vmatprep.subr.bf16.mxu0 0
        %2136 = vmatpush1.bf16.msra.mxu0 0
        %2137 = vmatprep.subr.bf16.mxu0 0
        %2138 = vmatpush1.bf16.msra.mxu0 0
        %2139 = vmatprep.mubr.bf16.mxu0 0
        %2140 = vmatmul.mubr.bf16.gmra.mrb[0].mxu0 %v1711
        %v2141 = vpop.f32.mrb[0].mxu0
        %v2142 = vadd.f32 0.0, %v2141
        %v2143 = vpop.f32.mrb[0].mxu0
        %v2144 = vadd.f32 0.0, %v2143
        %v2145 = vpop.f32.mrb[0].mxu0
        %v2146 = vadd.f32 0.0, %v2145
        %v2147 = vpop.f32.mrb[0].mxu0
        %v2148 = vadd.f32 0.0, %v2147
        %2149 = vmatprep.mubr.bf16.mxu0 0
        %2150 = vmatmul.mubr.bf16.gmra.mrb[0].mxu0 %v1712
        %v2151 = vpop.f32.mrb[0].mxu0
        %v2152 = vadd.f32 0.0, %v2151
        %v2153 = vpop.f32.mrb[0].mxu0
        %v2154 = vadd.f32 0.0, %v2153
        %v2155 = vpop.f32.mrb[0].mxu0
        %v2156 = vadd.f32 0.0, %v2155
        %v2157 = vpop.f32.mrb[0].mxu0
        %v2158 = vadd.f32 0.0, %v2157
        %2159 = vdwg.mxu0
        %v2161 = vlaneseq
        %v2162 = vshrl.u32 %v2161, 7
        %v2163 = vsub.s32 0, %v2162
        %v2164 = vrot.slane %v335, %v2163
        %v2165 = vlaneseq
        %v2166 = vshrl.u32 %v2165, 7
        %v2167 = vsub.s32 1, %v2166
        %v2168 = vrot.slane %v335, %v2167
        %v2169 = vlaneseq
        %v2170 = vshrl.u32 %v2169, 7
        %v2171 = vsub.s32 2, %v2170
        %v2172 = vrot.slane %v335, %v2171
        %v2173 = vlaneseq
        %v2174 = vshrl.u32 %v2173, 7
        %v2175 = vsub.s32 3, %v2174
        %v2176 = vrot.slane %v335, %v2175
        %v2177 = vlaneseq
        %v2178 = vshrl.u32 %v2177, 7
        %v2179 = vsub.s32 4, %v2178
        %v2180 = vrot.slane %v335, %v2179
        %v2181 = vlaneseq
        %v2182 = vshrl.u32 %v2181, 7
        %v2183 = vsub.s32 5, %v2182
        %v2184 = vrot.slane %v335, %v2183
        %v2191 = vmul.f32 %v2036, %v2164
        %v2192 = vmul.f32 %v2038, %v2168
        %v2193 = vmul.f32 %v2089, %v2172
        %v2194 = vmul.f32 %v2091, %v2176
        %v2195 = vmul.f32 %v2142, %v2180
        %v2196 = vmul.f32 %v2144, %v2184
        %v2197 = vmul.f32 %v2040, %v2164
        %v2198 = vmul.f32 %v2042, %v2168
        %v2199 = vmul.f32 %v2093, %v2172
        %v2200 = vmul.f32 %v2095, %v2176
        %v2201 = vmul.f32 %v2146, %v2180
        %v2202 = vmul.f32 %v2148, %v2184
        %v2203 = vmul.f32 %v2046, %v2164
        %v2204 = vmul.f32 %v2048, %v2168
        %v2205 = vmul.f32 %v2099, %v2172
        %v2206 = vmul.f32 %v2101, %v2176
        %v2207 = vmul.f32 %v2152, %v2180
        %v2208 = vmul.f32 %v2154, %v2184
        %v2209 = vmul.f32 %v2050, %v2164
        %v2210 = vmul.f32 %v2052, %v2168
        %v2211 = vmul.f32 %v2103, %v2172
        %v2212 = vmul.f32 %v2105, %v2176
        %v2213 = vmul.f32 %v2156, %v2180
        %v2214 = vmul.f32 %v2158, %v2184
        %v2216 = vlaneseq
        %v2217 = vshrl.u32 %v2216, 7
        %v2218 = vsub.s32 0, %v2217
        %v2219 = vrot.slane %v337, %v2218
        %v2220 = vlaneseq
        %v2221 = vshrl.u32 %v2220, 7
        %v2222 = vsub.s32 1, %v2221
        %v2223 = vrot.slane %v337, %v2222
        %v2224 = vlaneseq
        %v2225 = vshrl.u32 %v2224, 7
        %v2226 = vsub.s32 2, %v2225
        %v2227 = vrot.slane %v337, %v2226
        %v2228 = vlaneseq
        %v2229 = vshrl.u32 %v2228, 7
        %v2230 = vsub.s32 3, %v2229
        %v2231 = vrot.slane %v337, %v2230
        %v2232 = vlaneseq
        %v2233 = vshrl.u32 %v2232, 7
        %v2234 = vsub.s32 4, %v2233
        %v2235 = vrot.slane %v337, %v2234
        %v2236 = vlaneseq
        %v2237 = vshrl.u32 %v2236, 7
        %v2238 = vsub.s32 5, %v2237
        %v2239 = vrot.slane %v337, %v2238
        %v2246 = vadd.f32 %v2191, %v2219
        %v2247 = vadd.f32 %v2192, %v2223
        %v2248 = vadd.f32 %v2193, %v2227
        %v2249 = vadd.f32 %v2194, %v2231
        %v2250 = vadd.f32 %v2195, %v2235
        %v2251 = vadd.f32 %v2196, %v2239
        %v2252 = vadd.f32 %v2197, %v2219
        %v2253 = vadd.f32 %v2198, %v2223
        %v2254 = vadd.f32 %v2199, %v2227
        %v2255 = vadd.f32 %v2200, %v2231
        %v2256 = vadd.f32 %v2201, %v2235
        %v2257 = vadd.f32 %v2202, %v2239
        %v2258 = vadd.f32 %v2203, %v2219
        %v2259 = vadd.f32 %v2204, %v2223
        %v2260 = vadd.f32 %v2205, %v2227
        %v2261 = vadd.f32 %v2206, %v2231
        %v2262 = vadd.f32 %v2207, %v2235
        %v2263 = vadd.f32 %v2208, %v2239
        %v2264 = vadd.f32 %v2209, %v2219
        %v2265 = vadd.f32 %v2210, %v2223
        %v2266 = vadd.f32 %v2211, %v2227
        %v2267 = vadd.f32 %v2212, %v2231
        %v2268 = vadd.f32 %v2213, %v2235
        %v2269 = vadd.f32 %v2214, %v2239
        %2270 = vst [vmem:[%s326] sm:$0xff] %v2246
        %2271 = vst [vmem:[%s326 + $0x8] sm:$0xff] %v2247
        %2272 = vst [vmem:[%s326 + $0x10] sm:$0xff] %v2248
        %2273 = vst [vmem:[%s326 + $0x18] sm:$0xff] %v2249
        %2274 = vst [vmem:[%s326 + $0x20] sm:$0xff] %v2250
        %2275 = vst [vmem:[%s326 + $0x28] sm:$0xff] %v2251
        %2276 = vst [vmem:[%s326 + $0x30] sm:$0xff] %v2252
        %2277 = vst [vmem:[%s326 + $0x38] sm:$0xff] %v2253
        %2278 = vst [vmem:[%s326 + $0x40] sm:$0xff] %v2254
        %2279 = vst [vmem:[%s326 + $0x48] sm:$0xff] %v2255
        %2280 = vst [vmem:[%s326 + $0x50] sm:$0xff] %v2256
        %2281 = vst [vmem:[%s326 + $0x58] sm:$0xff] %v2257
        %2282 = vst [vmem:[%s326 + $0x60] sm:$0xff] %v2258
        %2283 = vst [vmem:[%s326 + $0x68] sm:$0xff] %v2259
        %2284 = vst [vmem:[%s326 + $0x70] sm:$0xff] %v2260
        %2285 = vst [vmem:[%s326 + $0x78] sm:$0xff] %v2261
        %2286 = vst [vmem:[%s326 + $0x80] sm:$0xff] %v2262
        %2287 = vst [vmem:[%s326 + $0x88] sm:$0xff] %v2263
        %2288 = vst [vmem:[%s326 + $0x90] sm:$0xff] %v2264
        %2289 = vst [vmem:[%s326 + $0x98] sm:$0xff] %v2265
        %2290 = vst [vmem:[%s326 + $0xa0] sm:$0xff] %v2266
        %2291 = vst [vmem:[%s326 + $0xa8] sm:$0xff] %v2267
        %2292 = vst [vmem:[%s326 + $0xb0] sm:$0xff] %v2268
        %2293 = vst [vmem:[%s326 + $0xb8] sm:$0xff] %v2269
        %s2294 = sand.u32 %s164, 1
        %s2295 = scalar_lea.sflag [#allocation5], %s2294
        %s2296 = sand.u32 %s164, 1
        %s2297 = smul.addr %s2296, 192
        %s2298 = scalar_lea.vmem [#allocation12], %s2297
        // Predicated region
        $region65: #{tpu_custom_call.1} parent=43 // pred_check
          %p2299 = pneg %p174
        $region66: #{tpu_custom_call.1} parent=43 // pred_check_branch
          %2301 = sbr.rel (%p2299) target = $region68
        $region67: #{tpu_custom_call.1} parent=43 // pred_region
          %s2302 = smul.u32 2, %s25
          %s2304 = ssub.s32 3072, 3072
          %2305 = vsyncadd %s2295, %s2304
          %s2306 = smul.addr %s2302, 12
          %s2307 = smul.addr %s2306, 128
          %s2308 = scalar_lea.hbm %s6, %s2307
          %s2309 = sshll.u32 %s2298, 4
          %s2310 = int_to_ptr.vmem [resolvable:$true] %s2309
          %2315 = dma.vmem_to_hbm [thread:$0]  %s2310, 3072, %s2308, %s2295, 768, 768, 48
        $region68: #{tpu_custom_call.1} parent=43 // pred_fallthru
          _
      $region44: #{tpu_custom_call.1} parent=5 // pred_fallthru
        _
      %p2316 = scmp.le.s32.totalorder 2, %s20
      // Predicated region
      $region69: #{tpu_custom_call.1} parent=5 // pred_check
        %p2317 = pneg %p2316
      $region70: #{tpu_custom_call.1} parent=5 // pred_check_branch
        %2319 = sbr.rel (%p2317) target = $region72
      $region71: #{tpu_custom_call.1} parent=5 // pred_region
        %s2320 = ssub.s32 %s20, 2
        // Predicated region
        $region73: #{tpu_custom_call.1} parent=71 // pred_check
          %p2321 = pneg %p180
        $region74: #{tpu_custom_call.1} parent=71 // pred_check_branch
          %2323 = sbr.rel (%p2321) target = $region76
        $region75: #{tpu_custom_call.1} parent=71 // pred_region
          %s2324 = sand.u32 %s165, 1
          %s2325 = scalar_lea.sflag [#allocation5], %s2324
          %s2326 = sand.u32 %s165, 1
          %s2327 = smul.addr %s2326, 192
          %s2328 = scalar_lea.vmem [#allocation12], %s2327
          %2329 = dma.done %s2325, 3072
        $region76: #{tpu_custom_call.1} parent=71 // pred_fallthru
          _
      $region72: #{tpu_custom_call.1} parent=5 // pred_fallthru
        _
    $region6: #{tpu_custom_call.1} parent=1 // loop_footer
      %s24 = sadd.s32 1, %s20
    $region7: #{tpu_custom_call.1} parent=1 // loop_footer_branch
      %19 = sbr.rel target = $region3
    $region8: #{tpu_custom_call.1} parent=1 // loop_exit
      _
    %2330 = vsyncpa [#allocation4], 1
    %s2331 = scalar_lea.sflag [#allocation4], 1
    %2332 = vsyncpa %s2331, 1
    %2333 = vsyncpa [#allocation7], 1
    %2334 = vsyncpa [#allocation10], 1
    %2335 = vsyncpa [#allocation5], 1
    %s2336 = scalar_lea.sflag [#allocation5], 1
    %2337 = vsyncpa %s2336, 1

</llo_original>
